<compile_context>
chip_gen: v7x
topology: tpu7x:2x2x1
jax: 0.10.0
libtpu: 0.0.40
codegen_flags: <defaults>
</compile_context>

<pallas_src>
import functools
import math

import jax
import jax.numpy as jnp
import numpy as np
from jax.experimental import pallas as pl
from jax.experimental.pallas import tpu as pltpu

SQRT2 = math.sqrt(2.0)
NEG_SLOPE = 0.2


# ---------------------------------------------------------------------------
# Host-side construction of the composed separable up-2x operators
# ---------------------------------------------------------------------------
def _up1d_matrix(n):
    """(2n, n) matrix M with (M @ y) == 1-D upfirdn up=2, pad=(2,1), kernel [1,3,3,1]."""
    k = np.array([1.0, 3.0, 3.0, 1.0], np.float64)
    k = k / k.sum() * 2.0                      # separable 1-D taps: [.25, .75, .75, .25]
    a0, a1 = k[0], k[1]
    m = np.zeros((2 * n, n), np.float64)
    for j in range(n):
        m[2 * j, j] = a1                       # out[2j]   += .75 * y[j]
        m[2 * j + 1, j] = a1                   # out[2j+1] += .75 * y[j]
        if 2 * j + 2 < 2 * n:
            m[2 * j + 2, j] = a0               # out[2j+2] += .25 * y[j]
        if 2 * j - 1 >= 0:
            m[2 * j - 1, j] = a0               # out[2j-1] += .25 * y[j]
    return m


def _compose_up_matrix(n, n_up):
    """Compose n_up successive 2x stages into one (n * 2**n_up, n) operator (exact taps)."""
    m = np.eye(n, dtype=np.float64)
    cur = n
    for _ in range(n_up):
        m = _up1d_matrix(cur) @ m
        cur *= 2
    return m


def _pick_row_tile(Hs, Ws, H, cout, op_itemsize, budget_bytes=6 * 2**20):
    """Largest multiple-of-8 divisor of Hs whose double-buffered tile-dependent blocks
    (output block + row-operator tile) fit the budget."""
    def cost(th):
        return 2 * 4 * cout * th * Ws + 2 * op_itemsize * th * H
    divs = [d for d in range(8, Hs + 1, 8) if Hs % d == 0]
    if not divs:
        return Hs
    fit = [d for d in divs if cost(d) <= budget_bytes]
    return max(fit) if fit else divs[0]


# ---------------------------------------------------------------------------
# Fused kernel: conv1(1x1) + leaky_relu + conv2(1x1) + composed 2**n_up upsample
# ---------------------------------------------------------------------------
def _to_spatial_code_kernel(x_ref, a_ref, u_ref, w1_ref, b1_ref, w2_ref, b2_ref,
                            o_ref, *, n_up, cast_bf16):
    # x_ref : (cin, H, W)     VMEM (batch dim squeezed; same block across row tiles)
    # a_ref : (TH, H)         VMEM tile of the composed row-upsample operator
    # u_ref : (W, Ws)         VMEM composed column-upsample operator (grid-resident)
    # w1/b1/w2/b2             SMEM (scalar-read weights; sqrt(2) already folded in w2)
    # o_ref : (cout, TH, Ws)  VMEM
    cin, H, _ = x_ref.shape
    chid = w1_ref.shape[1]
    cout = w2_ref.shape[1]

    # ---- conv1 (1x1) + bias + leaky_relu(0.2): unrolled VPU broadcast-FMAs -------------
    xs = [x_ref[i] for i in range(cin)]              # per-channel (H, W) planes
    hs = []
    for j in range(chid):
        acc = xs[0] * w1_ref[0, j]
        for i in range(1, cin):
            acc = acc + xs[i] * w1_ref[i, j]
        acc = acc + b1_ref[j]
        hs.append(jnp.where(acc >= 0.0, acc, NEG_SLOPE * acc))   # *sqrt(2) folded into w2

    # ---- conv2 (1x1) + bias ------------------------------------------------------------
    ys = []
    for c in range(cout):
        acc = hs[0] * w2_ref[0, c]
        for j in range(1, chid):
            acc = acc + hs[j] * w2_ref[j, c]
        ys.append(acc + b2_ref[c])                   # (H, W) conv2 output, channel c

    if n_up == 0:
        for c in range(cout):
            o_ref[c] = ys[c].astype(o_ref.dtype)
        return

    # ---- fused 2**n_up upsample: batched column pass first (N = Ws), then row tile -----
    Y = jnp.concatenate(ys, axis=0)                  # (cout*H, W)   channels stacked on M
    if cast_bf16:
        Y = Y.astype(jnp.bfloat16)
    Z = jnp.dot(Y, u_ref[...], preferred_element_type=jnp.float32)     # (cout*H, Ws)
    if cast_bf16:
        Z = Z.astype(jnp.bfloat16)
    A = a_ref[...]                                   # (TH, H) hoisted out of the loop
    for c in range(cout):
        o_ref[c] = jnp.dot(A, Z[c * H:(c + 1) * H, :],
                           preferred_element_type=jnp.float32).astype(o_ref.dtype)


# ---------------------------------------------------------------------------
# Wrapper
# ---------------------------------------------------------------------------
def to_spatial_code(x, params, scale, *, use_bf16_mxu=False):
    """x: (B, inch, H, W) float32, NCHW exactly like the PyTorch module."""
    B, cin, H, W = x.shape
    chid = params["w1"].shape[1]
    cout = params["w2"].shape[1]

    scale = int(scale)
    assert scale >= 1 and (scale & (scale - 1)) == 0, "scale must be a power of two"
    n_up = int(math.log2(scale))
    s = 2 ** n_up
    Hs, Ws = H * s, W * s

    # Operator dtype: bf16 entries are exact dyadics; activations get rounded in-kernel.
    op_dtype = jnp.bfloat16 if use_bf16_mxu else jnp.float32

    # Fold the FusedLeakyReLU sqrt(2) gain into conv2's (linear) weight, host-side.
    w2_eff = params["w2"] * np.float32(SQRT2)

    # Pre-composed separable upsample operators (exact dyadic entries).
    A = jnp.asarray(_compose_up_matrix(H, n_up), op_dtype)          # (Hs, H)  row operator
    U = jnp.asarray(_compose_up_matrix(W, n_up).T, op_dtype)        # (W, Ws)  col operator

    # Output-row tiling (second grid axis): keeps per-step VMEM small and pipelined.
    if n_up == 0:
        TH = Hs
    else:
        TH = _pick_row_tile(Hs, Ws, H, cout, jnp.dtype(op_dtype).itemsize)
    n_row = Hs // TH

    kern = functools.partial(_to_spatial_code_kernel, n_up=n_up, cast_bf16=use_bf16_mxu)

    # Advisory cost estimate for XLA scheduling around the custom call.
    conv_flops = 2 * H * W * (cin * chid + chid * cout)
    col_flops = 2 * (cout * H) * W * Ws
    row_flops = 2 * cout * TH * H * Ws
    flops = B * n_row * (conv_flops + (col_flops + row_flops if n_up > 0 else 0))
    bytes_accessed = (4 * B * (cin * H * W + cout * Hs * Ws)
                      + jnp.dtype(op_dtype).itemsize * (Hs * H + W * Ws))
    cost = pl.CostEstimate(flops=int(flops), transcendentals=0,
                           bytes_accessed=int(bytes_accessed))

    # Explicit scoped-VMEM limit: >= every chip's default, <= v7x's 64 MiB physical.
    vmem_limit = 32 * 1024 * 1024

    smem = pl.BlockSpec(memory_space=pltpu.MemorySpace.SMEM)
    # NOTE: U's block never changes across the grid; pipeline_mode=pl.Buffered(1) would
    # save one redundant buffer but is skipped here for maximum compiler compatibility.
    return pl.pallas_call(
        kern,
        out_shape=jax.ShapeDtypeStruct((B, cout, Hs, Ws), x.dtype),
        grid=(B, n_row),
        in_specs=[
            pl.BlockSpec((None, cin, H, W), lambda b, i: (b, 0, 0, 0)),  # x, one image
            pl.BlockSpec((TH, H), lambda b, i: (i, 0)),                  # row-op tile
            pl.BlockSpec((W, Ws), lambda b, i: (0, 0)),                  # col operator
            smem, smem, smem, smem,                                      # w1, b1, w2, b2
        ],
        out_specs=pl.BlockSpec((None, cout, TH, Ws), lambda b, i: (b, 0, i, 0)),
        compiler_params=pltpu.CompilerParams(
            dimension_semantics=("parallel", "parallel"),
            vmem_limit_bytes=vmem_limit),
        cost_estimate=cost,
    )(x, A, U, params["w1"], params["b1"], w2_eff, params["b2"])


# ---------------------------------------------------------------------------
# Pure-JAX reference (independent construction, for validation)
# ---------------------------------------------------------------------------
def _upfirdn2d_up2_ref(x, k4):
    B, C, H, W = x.shape
    u = jnp.zeros((B, C, 2 * H, 2 * W), x.dtype).at[:, :, ::2, ::2].set(x)
    p = jnp.pad(u, ((0, 0), (0, 0), (2, 1), (2, 1)))
    lhs = p.reshape(B * C, 1, 2 * H + 3, 2 * W + 3)
    rhs = k4[None, None]                                   # symmetric kernel: flip == no flip
    out = jax.lax.conv_general_dilated(lhs, rhs, (1, 1), "VALID",
                                       precision=jax.lax.Precision.HIGHEST)
    return out.reshape(B, C, 2 * H, 2 * W)


def ref_forward(x, params, scale):
    hi = jax.lax.Precision.HIGHEST
    h = jnp.einsum("bchw,cd->bdhw", x, params["w1"], precision=hi)
    h = h + params["b1"][None, :, None, None]
    h = jnp.where(h >= 0, h, NEG_SLOPE * h) * SQRT2
    y = jnp.einsum("bchw,cd->bdhw", h, params["w2"], precision=hi)
    y = y + params["b2"][None, :, None, None]
    k = np.array([1.0, 3.0, 3.0, 1.0])
    k2 = np.outer(k, k)
    k2 = k2 / k2.sum() * 4.0
    k4 = jnp.asarray(k2, jnp.float32)
    for _ in range(int(np.log2(scale))):
        y = _upfirdn2d_up2_ref(y, k4)
    return y


# ---------------------------------------------------------------------------
if __name__ == "__main__":
    inch, outch, scale = 8, 4, 4
    hiddench = inch // 2
    B, H, W = 2, 16, 16

    key = jax.random.PRNGKey(0)
    kx, kw1, kb1, kw2, kb2 = jax.random.split(key, 5)

    # Deterministic synthetic parameters (EqualConv2d 1/sqrt(fan_in) scale folded in).
    params = {
        "w1": (jax.random.normal(kw1, (inch, hiddench), jnp.float32)
               * (1.0 / math.sqrt(inch))),
        "b1": 0.1 * jax.random.normal(kb1, (hiddench,), jnp.float32),
        "w2": (jax.random.normal(kw2, (hiddench, outch), jnp.float32)
               * (1.0 / math.sqrt(hiddench))),
        "b2": 0.1 * jax.random.normal(kb2, (outch,), jnp.float32),
    }

    # NCHW input, same layout as the PyTorch module.
    x = jax.random.normal(kx, (B, inch, H, W), jnp.float32)

    expected = ref_forward(x, params, scale)

    # Default exact (f32-operator) path.
    out = jax.block_until_ready(to_spatial_code(x, params, scale))
    assert out.shape == (B, outch, H * scale, W * scale), out.shape
    np.testing.assert_allclose(np.asarray(out), np.asarray(expected),
                               rtol=1e-4, atol=1e-5)

    # Optional fast path: native-bf16 MXU matmuls (operators exact in bf16, activations
    # rounded) -> ~1e-2 relative error budget, much faster on the MXU at production sizes.
    out_bf16 = jax.block_until_ready(
        to_spatial_code(x, params, scale, use_bf16_mxu=True))
    np.testing.assert_allclose(np.asarray(out_bf16), np.asarray(expected),
                               rtol=5e-2, atol=5e-2)

    print("KERNEL_OK")
</pallas_src>

<mosaic_0001>
module attributes {stable_mosaic.version = 11 : i64} {
  func.func @_to_spatial_code_kernel(%arg0: i32, %arg1: i32, %arg2: memref<1x8x16x16xf32, #tpu.memory_space<vmem>>, %arg3: memref<64x16xf32, #tpu.memory_space<vmem>>, %arg4: memref<16x64xf32, #tpu.memory_space<vmem>>, %arg5: memref<8x4xf32, #tpu.memory_space<smem>>, %arg6: memref<4xf32, #tpu.memory_space<smem>>, %arg7: memref<4x4xf32, #tpu.memory_space<smem>>, %arg8: memref<4xf32, #tpu.memory_space<smem>>, %arg9: memref<1x4x64x64xf32, #tpu.memory_space<vmem>>) attributes {dimension_semantics = [#tpu.dimension_semantics<parallel>, #tpu.dimension_semantics<parallel>], iteration_bounds = array<i64: 2, 1>, scalar_prefetch = 0 : i64, scratch_operands = 0 : i64, tpu.core_type = #tpu.core_type<tc>, window_params = [{transform_indices = @transform_0, window_bounds = array<i64: 1, 8, 16, 16>}, {transform_indices = @transform_1, window_bounds = array<i64: 64, 16>}, {pipeline_mode = #tpu.pipeline_mode<synchronous>, transform_indices = @transform_2, window_bounds = array<i64: 16, 64>}, {transform_indices = @transform_3, window_bounds = array<i64: 8, 4>}, {transform_indices = @transform_4, window_bounds = array<i64: 4>}, {transform_indices = @transform_5, window_bounds = array<i64: 4, 4>}, {transform_indices = @transform_6, window_bounds = array<i64: 4>}, {transform_indices = @transform_7, window_bounds = array<i64: 1, 4, 64, 64>}]} {
    %c0 = arith.constant 0 : index
    %c0_0 = arith.constant 0 : index
    %c0_1 = arith.constant 0 : index
    %c0_2 = arith.constant 0 : index
    %0 = vector.load %arg2[%c0, %c0_0, %c0_1, %c0_2] : memref<1x8x16x16xf32, #tpu.memory_space<vmem>>, vector<1x1x16x16xf32>
    %1 = vector.shape_cast %0 : vector<1x1x16x16xf32> to vector<16x16xf32>
    %c0_3 = arith.constant 0 : index
    %c1 = arith.constant 1 : index
    %c0_4 = arith.constant 0 : index
    %c0_5 = arith.constant 0 : index
    %2 = vector.load %arg2[%c0_3, %c1, %c0_4, %c0_5] : memref<1x8x16x16xf32, #tpu.memory_space<vmem>>, vector<1x1x16x16xf32>
    %3 = vector.shape_cast %2 : vector<1x1x16x16xf32> to vector<16x16xf32>
    %c0_6 = arith.constant 0 : index
    %c2 = arith.constant 2 : index
    %c0_7 = arith.constant 0 : index
    %c0_8 = arith.constant 0 : index
    %4 = vector.load %arg2[%c0_6, %c2, %c0_7, %c0_8] : memref<1x8x16x16xf32, #tpu.memory_space<vmem>>, vector<1x1x16x16xf32>
    %5 = vector.shape_cast %4 : vector<1x1x16x16xf32> to vector<16x16xf32>
    %c0_9 = arith.constant 0 : index
    %c3 = arith.constant 3 : index
    %c0_10 = arith.constant 0 : index
    %c0_11 = arith.constant 0 : index
    %6 = vector.load %arg2[%c0_9, %c3, %c0_10, %c0_11] : memref<1x8x16x16xf32, #tpu.memory_space<vmem>>, vector<1x1x16x16xf32>
    %7 = vector.shape_cast %6 : vector<1x1x16x16xf32> to vector<16x16xf32>
    %c0_12 = arith.constant 0 : index
    %c4 = arith.constant 4 : index
    %c0_13 = arith.constant 0 : index
    %c0_14 = arith.constant 0 : index
    %8 = vector.load %arg2[%c0_12, %c4, %c0_13, %c0_14] : memref<1x8x16x16xf32, #tpu.memory_space<vmem>>, vector<1x1x16x16xf32>
    %9 = vector.shape_cast %8 : vector<1x1x16x16xf32> to vector<16x16xf32>
    %c0_15 = arith.constant 0 : index
    %c5 = arith.constant 5 : index
    %c0_16 = arith.constant 0 : index
    %c0_17 = arith.constant 0 : index
    %10 = vector.load %arg2[%c0_15, %c5, %c0_16, %c0_17] : memref<1x8x16x16xf32, #tpu.memory_space<vmem>>, vector<1x1x16x16xf32>
    %11 = vector.shape_cast %10 : vector<1x1x16x16xf32> to vector<16x16xf32>
    %c0_18 = arith.constant 0 : index
    %c6 = arith.constant 6 : index
    %c0_19 = arith.constant 0 : index
    %c0_20 = arith.constant 0 : index
    %12 = vector.load %arg2[%c0_18, %c6, %c0_19, %c0_20] : memref<1x8x16x16xf32, #tpu.memory_space<vmem>>, vector<1x1x16x16xf32>
    %13 = vector.shape_cast %12 : vector<1x1x16x16xf32> to vector<16x16xf32>
    %c0_21 = arith.constant 0 : index
    %c7 = arith.constant 7 : index
    %c0_22 = arith.constant 0 : index
    %c0_23 = arith.constant 0 : index
    %14 = vector.load %arg2[%c0_21, %c7, %c0_22, %c0_23] : memref<1x8x16x16xf32, #tpu.memory_space<vmem>>, vector<1x1x16x16xf32>
    %15 = vector.shape_cast %14 : vector<1x1x16x16xf32> to vector<16x16xf32>
    %c0_24 = arith.constant 0 : index
    %c0_25 = arith.constant 0 : index
    %16 = memref.load %arg5[%c0_24, %c0_25] : memref<8x4xf32, #tpu.memory_space<smem>>
    %17 = vector.broadcast %16 : f32 to vector<16x16xf32>
    %18 = arith.mulf %1, %17 : vector<16x16xf32>
    %c1_26 = arith.constant 1 : index
    %c0_27 = arith.constant 0 : index
    %19 = memref.load %arg5[%c1_26, %c0_27] : memref<8x4xf32, #tpu.memory_space<smem>>
    %20 = vector.broadcast %19 : f32 to vector<16x16xf32>
    %21 = arith.mulf %3, %20 : vector<16x16xf32>
    %22 = arith.addf %18, %21 : vector<16x16xf32>
    %c2_28 = arith.constant 2 : index
    %c0_29 = arith.constant 0 : index
    %23 = memref.load %arg5[%c2_28, %c0_29] : memref<8x4xf32, #tpu.memory_space<smem>>
    %24 = vector.broadcast %23 : f32 to vector<16x16xf32>
    %25 = arith.mulf %5, %24 : vector<16x16xf32>
    %26 = arith.addf %22, %25 : vector<16x16xf32>
    %c3_30 = arith.constant 3 : index
    %c0_31 = arith.constant 0 : index
    %27 = memref.load %arg5[%c3_30, %c0_31] : memref<8x4xf32, #tpu.memory_space<smem>>
    %28 = vector.broadcast %27 : f32 to vector<16x16xf32>
    %29 = arith.mulf %7, %28 : vector<16x16xf32>
    %30 = arith.addf %26, %29 : vector<16x16xf32>
    %c4_32 = arith.constant 4 : index
    %c0_33 = arith.constant 0 : index
    %31 = memref.load %arg5[%c4_32, %c0_33] : memref<8x4xf32, #tpu.memory_space<smem>>
    %32 = vector.broadcast %31 : f32 to vector<16x16xf32>
    %33 = arith.mulf %9, %32 : vector<16x16xf32>
    %34 = arith.addf %30, %33 : vector<16x16xf32>
    %c5_34 = arith.constant 5 : index
    %c0_35 = arith.constant 0 : index
    %35 = memref.load %arg5[%c5_34, %c0_35] : memref<8x4xf32, #tpu.memory_space<smem>>
    %36 = vector.broadcast %35 : f32 to vector<16x16xf32>
    %37 = arith.mulf %11, %36 : vector<16x16xf32>
    %38 = arith.addf %34, %37 : vector<16x16xf32>
    %c6_36 = arith.constant 6 : index
    %c0_37 = arith.constant 0 : index
    %39 = memref.load %arg5[%c6_36, %c0_37] : memref<8x4xf32, #tpu.memory_space<smem>>
    %40 = vector.broadcast %39 : f32 to vector<16x16xf32>
    %41 = arith.mulf %13, %40 : vector<16x16xf32>
    %42 = arith.addf %38, %41 : vector<16x16xf32>
    %c7_38 = arith.constant 7 : index
    %c0_39 = arith.constant 0 : index
    %43 = memref.load %arg5[%c7_38, %c0_39] : memref<8x4xf32, #tpu.memory_space<smem>>
    %44 = vector.broadcast %43 : f32 to vector<16x16xf32>
    %45 = arith.mulf %15, %44 : vector<16x16xf32>
    %46 = arith.addf %42, %45 : vector<16x16xf32>
    %c0_40 = arith.constant 0 : index
    %47 = memref.load %arg6[%c0_40] : memref<4xf32, #tpu.memory_space<smem>>
    %48 = vector.broadcast %47 : f32 to vector<16x16xf32>
    %49 = arith.addf %46, %48 : vector<16x16xf32>
    %cst = arith.constant 0.000000e+00 : f32
    %50 = vector.broadcast %cst : f32 to vector<16x16xf32>
    %51 = arith.cmpf oge, %49, %50 : vector<16x16xf32>
    %cst_41 = arith.constant 2.000000e-01 : f32
    %52 = vector.broadcast %cst_41 : f32 to vector<16x16xf32>
    %53 = arith.mulf %52, %49 : vector<16x16xf32>
    %54 = arith.select %51, %49, %53 : vector<16x16xi1>, vector<16x16xf32>
    %c0_42 = arith.constant 0 : index
    %c1_43 = arith.constant 1 : index
    %55 = memref.load %arg5[%c0_42, %c1_43] : memref<8x4xf32, #tpu.memory_space<smem>>
    %56 = vector.broadcast %55 : f32 to vector<16x16xf32>
    %57 = arith.mulf %1, %56 : vector<16x16xf32>
    %c1_44 = arith.constant 1 : index
    %c1_45 = arith.constant 1 : index
    %58 = memref.load %arg5[%c1_44, %c1_45] : memref<8x4xf32, #tpu.memory_space<smem>>
    %59 = vector.broadcast %58 : f32 to vector<16x16xf32>
    %60 = arith.mulf %3, %59 : vector<16x16xf32>
    %61 = arith.addf %57, %60 : vector<16x16xf32>
    %c2_46 = arith.constant 2 : index
    %c1_47 = arith.constant 1 : index
    %62 = memref.load %arg5[%c2_46, %c1_47] : memref<8x4xf32, #tpu.memory_space<smem>>
    %63 = vector.broadcast %62 : f32 to vector<16x16xf32>
    %64 = arith.mulf %5, %63 : vector<16x16xf32>
    %65 = arith.addf %61, %64 : vector<16x16xf32>
    %c3_48 = arith.constant 3 : index
    %c1_49 = arith.constant 1 : index
    %66 = memref.load %arg5[%c3_48, %c1_49] : memref<8x4xf32, #tpu.memory_space<smem>>
    %67 = vector.broadcast %66 : f32 to vector<16x16xf32>
    %68 = arith.mulf %7, %67 : vector<16x16xf32>
    %69 = arith.addf %65, %68 : vector<16x16xf32>
    %c4_50 = arith.constant 4 : index
    %c1_51 = arith.constant 1 : index
    %70 = memref.load %arg5[%c4_50, %c1_51] : memref<8x4xf32, #tpu.memory_space<smem>>
    %71 = vector.broadcast %70 : f32 to vector<16x16xf32>
    %72 = arith.mulf %9, %71 : vector<16x16xf32>
    %73 = arith.addf %69, %72 : vector<16x16xf32>
    %c5_52 = arith.constant 5 : index
    %c1_53 = arith.constant 1 : index
    %74 = memref.load %arg5[%c5_52, %c1_53] : memref<8x4xf32, #tpu.memory_space<smem>>
    %75 = vector.broadcast %74 : f32 to vector<16x16xf32>
    %76 = arith.mulf %11, %75 : vector<16x16xf32>
    %77 = arith.addf %73, %76 : vector<16x16xf32>
    %c6_54 = arith.constant 6 : index
    %c1_55 = arith.constant 1 : index
    %78 = memref.load %arg5[%c6_54, %c1_55] : memref<8x4xf32, #tpu.memory_space<smem>>
    %79 = vector.broadcast %78 : f32 to vector<16x16xf32>
    %80 = arith.mulf %13, %79 : vector<16x16xf32>
    %81 = arith.addf %77, %80 : vector<16x16xf32>
    %c7_56 = arith.constant 7 : index
    %c1_57 = arith.constant 1 : index
    %82 = memref.load %arg5[%c7_56, %c1_57] : memref<8x4xf32, #tpu.memory_space<smem>>
    %83 = vector.broadcast %82 : f32 to vector<16x16xf32>
    %84 = arith.mulf %15, %83 : vector<16x16xf32>
    %85 = arith.addf %81, %84 : vector<16x16xf32>
    %c1_58 = arith.constant 1 : index
    %86 = memref.load %arg6[%c1_58] : memref<4xf32, #tpu.memory_space<smem>>
    %87 = vector.broadcast %86 : f32 to vector<16x16xf32>
    %88 = arith.addf %85, %87 : vector<16x16xf32>
    %cst_59 = arith.constant 0.000000e+00 : f32
    %89 = vector.broadcast %cst_59 : f32 to vector<16x16xf32>
    %90 = arith.cmpf oge, %88, %89 : vector<16x16xf32>
    %cst_60 = arith.constant 2.000000e-01 : f32
    %91 = vector.broadcast %cst_60 : f32 to vector<16x16xf32>
    %92 = arith.mulf %91, %88 : vector<16x16xf32>
    %93 = arith.select %90, %88, %92 : vector<16x16xi1>, vector<16x16xf32>
    %c0_61 = arith.constant 0 : index
    %c2_62 = arith.constant 2 : index
    %94 = memref.load %arg5[%c0_61, %c2_62] : memref<8x4xf32, #tpu.memory_space<smem>>
    %95 = vector.broadcast %94 : f32 to vector<16x16xf32>
    %96 = arith.mulf %1, %95 : vector<16x16xf32>
    %c1_63 = arith.constant 1 : index
    %c2_64 = arith.constant 2 : index
    %97 = memref.load %arg5[%c1_63, %c2_64] : memref<8x4xf32, #tpu.memory_space<smem>>
    %98 = vector.broadcast %97 : f32 to vector<16x16xf32>
    %99 = arith.mulf %3, %98 : vector<16x16xf32>
    %100 = arith.addf %96, %99 : vector<16x16xf32>
    %c2_65 = arith.constant 2 : index
    %c2_66 = arith.constant 2 : index
    %101 = memref.load %arg5[%c2_65, %c2_66] : memref<8x4xf32, #tpu.memory_space<smem>>
    %102 = vector.broadcast %101 : f32 to vector<16x16xf32>
    %103 = arith.mulf %5, %102 : vector<16x16xf32>
    %104 = arith.addf %100, %103 : vector<16x16xf32>
    %c3_67 = arith.constant 3 : index
    %c2_68 = arith.constant 2 : index
    %105 = memref.load %arg5[%c3_67, %c2_68] : memref<8x4xf32, #tpu.memory_space<smem>>
    %106 = vector.broadcast %105 : f32 to vector<16x16xf32>
    %107 = arith.mulf %7, %106 : vector<16x16xf32>
    %108 = arith.addf %104, %107 : vector<16x16xf32>
    %c4_69 = arith.constant 4 : index
    %c2_70 = arith.constant 2 : index
    %109 = memref.load %arg5[%c4_69, %c2_70] : memref<8x4xf32, #tpu.memory_space<smem>>
    %110 = vector.broadcast %109 : f32 to vector<16x16xf32>
    %111 = arith.mulf %9, %110 : vector<16x16xf32>
    %112 = arith.addf %108, %111 : vector<16x16xf32>
    %c5_71 = arith.constant 5 : index
    %c2_72 = arith.constant 2 : index
    %113 = memref.load %arg5[%c5_71, %c2_72] : memref<8x4xf32, #tpu.memory_space<smem>>
    %114 = vector.broadcast %113 : f32 to vector<16x16xf32>
    %115 = arith.mulf %11, %114 : vector<16x16xf32>
    %116 = arith.addf %112, %115 : vector<16x16xf32>
    %c6_73 = arith.constant 6 : index
    %c2_74 = arith.constant 2 : index
    %117 = memref.load %arg5[%c6_73, %c2_74] : memref<8x4xf32, #tpu.memory_space<smem>>
    %118 = vector.broadcast %117 : f32 to vector<16x16xf32>
    %119 = arith.mulf %13, %118 : vector<16x16xf32>
    %120 = arith.addf %116, %119 : vector<16x16xf32>
    %c7_75 = arith.constant 7 : index
    %c2_76 = arith.constant 2 : index
    %121 = memref.load %arg5[%c7_75, %c2_76] : memref<8x4xf32, #tpu.memory_space<smem>>
    %122 = vector.broadcast %121 : f32 to vector<16x16xf32>
    %123 = arith.mulf %15, %122 : vector<16x16xf32>
    %124 = arith.addf %120, %123 : vector<16x16xf32>
    %c2_77 = arith.constant 2 : index
    %125 = memref.load %arg6[%c2_77] : memref<4xf32, #tpu.memory_space<smem>>
    %126 = vector.broadcast %125 : f32 to vector<16x16xf32>
    %127 = arith.addf %124, %126 : vector<16x16xf32>
    %cst_78 = arith.constant 0.000000e+00 : f32
    %128 = vector.broadcast %cst_78 : f32 to vector<16x16xf32>
    %129 = arith.cmpf oge, %127, %128 : vector<16x16xf32>
    %cst_79 = arith.constant 2.000000e-01 : f32
    %130 = vector.broadcast %cst_79 : f32 to vector<16x16xf32>
    %131 = arith.mulf %130, %127 : vector<16x16xf32>
    %132 = arith.select %129, %127, %131 : vector<16x16xi1>, vector<16x16xf32>
    %c0_80 = arith.constant 0 : index
    %c3_81 = arith.constant 3 : index
    %133 = memref.load %arg5[%c0_80, %c3_81] : memref<8x4xf32, #tpu.memory_space<smem>>
    %134 = vector.broadcast %133 : f32 to vector<16x16xf32>
    %135 = arith.mulf %1, %134 : vector<16x16xf32>
    %c1_82 = arith.constant 1 : index
    %c3_83 = arith.constant 3 : index
    %136 = memref.load %arg5[%c1_82, %c3_83] : memref<8x4xf32, #tpu.memory_space<smem>>
    %137 = vector.broadcast %136 : f32 to vector<16x16xf32>
    %138 = arith.mulf %3, %137 : vector<16x16xf32>
    %139 = arith.addf %135, %138 : vector<16x16xf32>
    %c2_84 = arith.constant 2 : index
    %c3_85 = arith.constant 3 : index
    %140 = memref.load %arg5[%c2_84, %c3_85] : memref<8x4xf32, #tpu.memory_space<smem>>
    %141 = vector.broadcast %140 : f32 to vector<16x16xf32>
    %142 = arith.mulf %5, %141 : vector<16x16xf32>
    %143 = arith.addf %139, %142 : vector<16x16xf32>
    %c3_86 = arith.constant 3 : index
    %c3_87 = arith.constant 3 : index
    %144 = memref.load %arg5[%c3_86, %c3_87] : memref<8x4xf32, #tpu.memory_space<smem>>
    %145 = vector.broadcast %144 : f32 to vector<16x16xf32>
    %146 = arith.mulf %7, %145 : vector<16x16xf32>
    %147 = arith.addf %143, %146 : vector<16x16xf32>
    %c4_88 = arith.constant 4 : index
    %c3_89 = arith.constant 3 : index
    %148 = memref.load %arg5[%c4_88, %c3_89] : memref<8x4xf32, #tpu.memory_space<smem>>
    %149 = vector.broadcast %148 : f32 to vector<16x16xf32>
    %150 = arith.mulf %9, %149 : vector<16x16xf32>
    %151 = arith.addf %147, %150 : vector<16x16xf32>
    %c5_90 = arith.constant 5 : index
    %c3_91 = arith.constant 3 : index
    %152 = memref.load %arg5[%c5_90, %c3_91] : memref<8x4xf32, #tpu.memory_space<smem>>
    %153 = vector.broadcast %152 : f32 to vector<16x16xf32>
    %154 = arith.mulf %11, %153 : vector<16x16xf32>
    %155 = arith.addf %151, %154 : vector<16x16xf32>
    %c6_92 = arith.constant 6 : index
    %c3_93 = arith.constant 3 : index
    %156 = memref.load %arg5[%c6_92, %c3_93] : memref<8x4xf32, #tpu.memory_space<smem>>
    %157 = vector.broadcast %156 : f32 to vector<16x16xf32>
    %158 = arith.mulf %13, %157 : vector<16x16xf32>
    %159 = arith.addf %155, %158 : vector<16x16xf32>
    %c7_94 = arith.constant 7 : index
    %c3_95 = arith.constant 3 : index
    %160 = memref.load %arg5[%c7_94, %c3_95] : memref<8x4xf32, #tpu.memory_space<smem>>
    %161 = vector.broadcast %160 : f32 to vector<16x16xf32>
    %162 = arith.mulf %15, %161 : vector<16x16xf32>
    %163 = arith.addf %159, %162 : vector<16x16xf32>
    %c3_96 = arith.constant 3 : index
    %164 = memref.load %arg6[%c3_96] : memref<4xf32, #tpu.memory_space<smem>>
    %165 = vector.broadcast %164 : f32 to vector<16x16xf32>
    %166 = arith.addf %163, %165 : vector<16x16xf32>
    %cst_97 = arith.constant 0.000000e+00 : f32
    %167 = vector.broadcast %cst_97 : f32 to vector<16x16xf32>
    %168 = arith.cmpf oge, %166, %167 : vector<16x16xf32>
    %cst_98 = arith.constant 2.000000e-01 : f32
    %169 = vector.broadcast %cst_98 : f32 to vector<16x16xf32>
    %170 = arith.mulf %169, %166 : vector<16x16xf32>
    %171 = arith.select %168, %166, %170 : vector<16x16xi1>, vector<16x16xf32>
    %c0_99 = arith.constant 0 : index
    %c0_100 = arith.constant 0 : index
    %172 = memref.load %arg7[%c0_99, %c0_100] : memref<4x4xf32, #tpu.memory_space<smem>>
    %173 = vector.broadcast %172 : f32 to vector<16x16xf32>
    %174 = arith.mulf %54, %173 : vector<16x16xf32>
    %c1_101 = arith.constant 1 : index
    %c0_102 = arith.constant 0 : index
    %175 = memref.load %arg7[%c1_101, %c0_102] : memref<4x4xf32, #tpu.memory_space<smem>>
    %176 = vector.broadcast %175 : f32 to vector<16x16xf32>
    %177 = arith.mulf %93, %176 : vector<16x16xf32>
    %178 = arith.addf %174, %177 : vector<16x16xf32>
    %c2_103 = arith.constant 2 : index
    %c0_104 = arith.constant 0 : index
    %179 = memref.load %arg7[%c2_103, %c0_104] : memref<4x4xf32, #tpu.memory_space<smem>>
    %180 = vector.broadcast %179 : f32 to vector<16x16xf32>
    %181 = arith.mulf %132, %180 : vector<16x16xf32>
    %182 = arith.addf %178, %181 : vector<16x16xf32>
    %c3_105 = arith.constant 3 : index
    %c0_106 = arith.constant 0 : index
    %183 = memref.load %arg7[%c3_105, %c0_106] : memref<4x4xf32, #tpu.memory_space<smem>>
    %184 = vector.broadcast %183 : f32 to vector<16x16xf32>
    %185 = arith.mulf %171, %184 : vector<16x16xf32>
    %186 = arith.addf %182, %185 : vector<16x16xf32>
    %c0_107 = arith.constant 0 : index
    %187 = memref.load %arg8[%c0_107] : memref<4xf32, #tpu.memory_space<smem>>
    %188 = vector.broadcast %187 : f32 to vector<16x16xf32>
    %189 = arith.addf %186, %188 : vector<16x16xf32>
    %c0_108 = arith.constant 0 : index
    %c1_109 = arith.constant 1 : index
    %190 = memref.load %arg7[%c0_108, %c1_109] : memref<4x4xf32, #tpu.memory_space<smem>>
    %191 = vector.broadcast %190 : f32 to vector<16x16xf32>
    %192 = arith.mulf %54, %191 : vector<16x16xf32>
    %c1_110 = arith.constant 1 : index
    %c1_111 = arith.constant 1 : index
    %193 = memref.load %arg7[%c1_110, %c1_111] : memref<4x4xf32, #tpu.memory_space<smem>>
    %194 = vector.broadcast %193 : f32 to vector<16x16xf32>
    %195 = arith.mulf %93, %194 : vector<16x16xf32>
    %196 = arith.addf %192, %195 : vector<16x16xf32>
    %c2_112 = arith.constant 2 : index
    %c1_113 = arith.constant 1 : index
    %197 = memref.load %arg7[%c2_112, %c1_113] : memref<4x4xf32, #tpu.memory_space<smem>>
    %198 = vector.broadcast %197 : f32 to vector<16x16xf32>
    %199 = arith.mulf %132, %198 : vector<16x16xf32>
    %200 = arith.addf %196, %199 : vector<16x16xf32>
    %c3_114 = arith.constant 3 : index
    %c1_115 = arith.constant 1 : index
    %201 = memref.load %arg7[%c3_114, %c1_115] : memref<4x4xf32, #tpu.memory_space<smem>>
    %202 = vector.broadcast %201 : f32 to vector<16x16xf32>
    %203 = arith.mulf %171, %202 : vector<16x16xf32>
    %204 = arith.addf %200, %203 : vector<16x16xf32>
    %c1_116 = arith.constant 1 : index
    %205 = memref.load %arg8[%c1_116] : memref<4xf32, #tpu.memory_space<smem>>
    %206 = vector.broadcast %205 : f32 to vector<16x16xf32>
    %207 = arith.addf %204, %206 : vector<16x16xf32>
    %c0_117 = arith.constant 0 : index
    %c2_118 = arith.constant 2 : index
    %208 = memref.load %arg7[%c0_117, %c2_118] : memref<4x4xf32, #tpu.memory_space<smem>>
    %209 = vector.broadcast %208 : f32 to vector<16x16xf32>
    %210 = arith.mulf %54, %209 : vector<16x16xf32>
    %c1_119 = arith.constant 1 : index
    %c2_120 = arith.constant 2 : index
    %211 = memref.load %arg7[%c1_119, %c2_120] : memref<4x4xf32, #tpu.memory_space<smem>>
    %212 = vector.broadcast %211 : f32 to vector<16x16xf32>
    %213 = arith.mulf %93, %212 : vector<16x16xf32>
    %214 = arith.addf %210, %213 : vector<16x16xf32>
    %c2_121 = arith.constant 2 : index
    %c2_122 = arith.constant 2 : index
    %215 = memref.load %arg7[%c2_121, %c2_122] : memref<4x4xf32, #tpu.memory_space<smem>>
    %216 = vector.broadcast %215 : f32 to vector<16x16xf32>
    %217 = arith.mulf %132, %216 : vector<16x16xf32>
    %218 = arith.addf %214, %217 : vector<16x16xf32>
    %c3_123 = arith.constant 3 : index
    %c2_124 = arith.constant 2 : index
    %219 = memref.load %arg7[%c3_123, %c2_124] : memref<4x4xf32, #tpu.memory_space<smem>>
    %220 = vector.broadcast %219 : f32 to vector<16x16xf32>
    %221 = arith.mulf %171, %220 : vector<16x16xf32>
    %222 = arith.addf %218, %221 : vector<16x16xf32>
    %c2_125 = arith.constant 2 : index
    %223 = memref.load %arg8[%c2_125] : memref<4xf32, #tpu.memory_space<smem>>
    %224 = vector.broadcast %223 : f32 to vector<16x16xf32>
    %225 = arith.addf %222, %224 : vector<16x16xf32>
    %c0_126 = arith.constant 0 : index
    %c3_127 = arith.constant 3 : index
    %226 = memref.load %arg7[%c0_126, %c3_127] : memref<4x4xf32, #tpu.memory_space<smem>>
    %227 = vector.broadcast %226 : f32 to vector<16x16xf32>
    %228 = arith.mulf %54, %227 : vector<16x16xf32>
    %c1_128 = arith.constant 1 : index
    %c3_129 = arith.constant 3 : index
    %229 = memref.load %arg7[%c1_128, %c3_129] : memref<4x4xf32, #tpu.memory_space<smem>>
    %230 = vector.broadcast %229 : f32 to vector<16x16xf32>
    %231 = arith.mulf %93, %230 : vector<16x16xf32>
    %232 = arith.addf %228, %231 : vector<16x16xf32>
    %c2_130 = arith.constant 2 : index
    %c3_131 = arith.constant 3 : index
    %233 = memref.load %arg7[%c2_130, %c3_131] : memref<4x4xf32, #tpu.memory_space<smem>>
    %234 = vector.broadcast %233 : f32 to vector<16x16xf32>
    %235 = arith.mulf %132, %234 : vector<16x16xf32>
    %236 = arith.addf %232, %235 : vector<16x16xf32>
    %c3_132 = arith.constant 3 : index
    %c3_133 = arith.constant 3 : index
    %237 = memref.load %arg7[%c3_132, %c3_133] : memref<4x4xf32, #tpu.memory_space<smem>>
    %238 = vector.broadcast %237 : f32 to vector<16x16xf32>
    %239 = arith.mulf %171, %238 : vector<16x16xf32>
    %240 = arith.addf %236, %239 : vector<16x16xf32>
    %c3_134 = arith.constant 3 : index
    %241 = memref.load %arg8[%c3_134] : memref<4xf32, #tpu.memory_space<smem>>
    %242 = vector.broadcast %241 : f32 to vector<16x16xf32>
    %243 = arith.addf %240, %242 : vector<16x16xf32>
    %244 = tpu.concatenate %189, %207, %225, %243 in 0 : vector<16x16xf32>, vector<16x16xf32>, vector<16x16xf32>, vector<16x16xf32> -> vector<64x16xf32>
    %c0_135 = arith.constant 0 : index
    %c0_136 = arith.constant 0 : index
    %245 = vector.load %arg4[%c0_135, %c0_136] : memref<16x64xf32, #tpu.memory_space<vmem>>, vector<16x64xf32>
    %cst_137 = arith.constant dense<0.000000e+00> : vector<64x64xf32>
    %246 = tpu.matmul %244, %245, %cst_137 {dimension_numbers = #tpu.dot_dimension_numbers<[1], [0], [0], [1], [0, 0, 1, 1], [], []>} : vector<64x16xf32>, vector<16x64xf32>, vector<64x64xf32> -> vector<64x64xf32>
    %c0_138 = arith.constant 0 : index
    %c0_139 = arith.constant 0 : index
    %247 = vector.load %arg3[%c0_138, %c0_139] : memref<64x16xf32, #tpu.memory_space<vmem>>, vector<64x16xf32>
    %248 = vector.extract_strided_slice %246 {offsets = [0, 0], sizes = [16, 64], strides = [1, 1]} : vector<64x64xf32> to vector<16x64xf32>
    %cst_140 = arith.constant dense<0.000000e+00> : vector<64x64xf32>
    %249 = tpu.matmul %247, %248, %cst_140 {dimension_numbers = #tpu.dot_dimension_numbers<[1], [0], [0], [1], [0, 0, 1, 1], [], []>} : vector<64x16xf32>, vector<16x64xf32>, vector<64x64xf32> -> vector<64x64xf32>
    %c0_141 = arith.constant 0 : index
    %c0_142 = arith.constant 0 : index
    %c0_143 = arith.constant 0 : index
    %c0_144 = arith.constant 0 : index
    %250 = vector.load %arg9[%c0_141, %c0_142, %c0_143, %c0_144] : memref<1x4x64x64xf32, #tpu.memory_space<vmem>>, vector<1x1x64x64xf32>
    %251 = vector.shape_cast %250 : vector<1x1x64x64xf32> to vector<64x64xf32>
    %252 = vector.shape_cast %249 : vector<64x64xf32> to vector<1x1x64x64xf32>
    tpu.vector_store %arg9[%c0_141, %c0_142, %c0_143, %c0_144], %252 {strides = array<i32>} : memref<1x4x64x64xf32, #tpu.memory_space<vmem>>, vector<1x1x64x64xf32>,
    %253 = vector.extract_strided_slice %246 {offsets = [16, 0], sizes = [16, 64], strides = [1, 1]} : vector<64x64xf32> to vector<16x64xf32>
    %cst_145 = arith.constant dense<0.000000e+00> : vector<64x64xf32>
    %254 = tpu.matmul %247, %253, %cst_145 {dimension_numbers = #tpu.dot_dimension_numbers<[1], [0], [0], [1], [0, 0, 1, 1], [], []>} : vector<64x16xf32>, vector<16x64xf32>, vector<64x64xf32> -> vector<64x64xf32>
    %c0_146 = arith.constant 0 : index
    %c1_147 = arith.constant 1 : index
    %c0_148 = arith.constant 0 : index
    %c0_149 = arith.constant 0 : index
    %255 = vector.load %arg9[%c0_146, %c1_147, %c0_148, %c0_149] : memref<1x4x64x64xf32, #tpu.memory_space<vmem>>, vector<1x1x64x64xf32>
    %256 = vector.shape_cast %255 : vector<1x1x64x64xf32> to vector<64x64xf32>
    %257 = vector.shape_cast %254 : vector<64x64xf32> to vector<1x1x64x64xf32>
    tpu.vector_store %arg9[%c0_146, %c1_147, %c0_148, %c0_149], %257 {strides = array<i32>} : memref<1x4x64x64xf32, #tpu.memory_space<vmem>>, vector<1x1x64x64xf32>,
    %258 = vector.extract_strided_slice %246 {offsets = [32, 0], sizes = [16, 64], strides = [1, 1]} : vector<64x64xf32> to vector<16x64xf32>
    %cst_150 = arith.constant dense<0.000000e+00> : vector<64x64xf32>
    %259 = tpu.matmul %247, %258, %cst_150 {dimension_numbers = #tpu.dot_dimension_numbers<[1], [0], [0], [1], [0, 0, 1, 1], [], []>} : vector<64x16xf32>, vector<16x64xf32>, vector<64x64xf32> -> vector<64x64xf32>
    %c0_151 = arith.constant 0 : index
    %c2_152 = arith.constant 2 : index
    %c0_153 = arith.constant 0 : index
    %c0_154 = arith.constant 0 : index
    %260 = vector.load %arg9[%c0_151, %c2_152, %c0_153, %c0_154] : memref<1x4x64x64xf32, #tpu.memory_space<vmem>>, vector<1x1x64x64xf32>
    %261 = vector.shape_cast %260 : vector<1x1x64x64xf32> to vector<64x64xf32>
    %262 = vector.shape_cast %259 : vector<64x64xf32> to vector<1x1x64x64xf32>
    tpu.vector_store %arg9[%c0_151, %c2_152, %c0_153, %c0_154], %262 {strides = array<i32>} : memref<1x4x64x64xf32, #tpu.memory_space<vmem>>, vector<1x1x64x64xf32>,
    %263 = vector.extract_strided_slice %246 {offsets = [48, 0], sizes = [16, 64], strides = [1, 1]} : vector<64x64xf32> to vector<16x64xf32>
    %cst_155 = arith.constant dense<0.000000e+00> : vector<64x64xf32>
    %264 = tpu.matmul %247, %263, %cst_155 {dimension_numbers = #tpu.dot_dimension_numbers<[1], [0], [0], [1], [0, 0, 1, 1], [], []>} : vector<64x16xf32>, vector<16x64xf32>, vector<64x64xf32> -> vector<64x64xf32>
    %c0_156 = arith.constant 0 : index
    %c3_157 = arith.constant 3 : index
    %c0_158 = arith.constant 0 : index
    %c0_159 = arith.constant 0 : index
    %265 = vector.load %arg9[%c0_156, %c3_157, %c0_158, %c0_159] : memref<1x4x64x64xf32, #tpu.memory_space<vmem>>, vector<1x1x64x64xf32>
    %266 = vector.shape_cast %265 : vector<1x1x64x64xf32> to vector<64x64xf32>
    %267 = vector.shape_cast %264 : vector<64x64xf32> to vector<1x1x64x64xf32>
    tpu.vector_store %arg9[%c0_156, %c3_157, %c0_158, %c0_159], %267 {strides = array<i32>} : memref<1x4x64x64xf32, #tpu.memory_space<vmem>>, vector<1x1x64x64xf32>,
    return
  }
  func.func @transform_0(%arg0: i32, %arg1: i32) -> (i32, i32, i32, i32) {
    %c0_i32 = arith.constant 0 : i32
    %c0_i32_0 = arith.constant 0 : i32
    %c0_i32_1 = arith.constant 0 : i32
    %c0_i32_2 = arith.constant 0 : i32
    return %arg0, %c0_i32, %c0_i32_0, %c0_i32_1 : i32, i32, i32, i32
  }
  func.func @transform_1(%arg0: i32, %arg1: i32) -> (i32, i32) {
    %c0_i32 = arith.constant 0 : i32
    %c0_i32_0 = arith.constant 0 : i32
    return %arg1, %c0_i32 : i32, i32
  }
  func.func @transform_2(%arg0: i32, %arg1: i32) -> (i32, i32) {
    %c0_i32 = arith.constant 0 : i32
    %c0_i32_0 = arith.constant 0 : i32
    %c0_i32_1 = arith.constant 0 : i32
    return %c0_i32, %c0_i32_0 : i32, i32
  }
  func.func @transform_3(%arg0: i32, %arg1: i32) -> (i32, i32) {
    %c0_i32 = arith.constant 0 : i32
    %c0_i32_0 = arith.constant 0 : i32
    %c0_i32_1 = arith.constant 0 : i32
    return %c0_i32, %c0_i32_0 : i32, i32
  }
  func.func @transform_4(%arg0: i32, %arg1: i32) -> i32 {
    %c0_i32 = arith.constant 0 : i32
    %c0_i32_0 = arith.constant 0 : i32
    return %c0_i32 : i32
  }
  func.func @transform_5(%arg0: i32, %arg1: i32) -> (i32, i32) {
    %c0_i32 = arith.constant 0 : i32
    %c0_i32_0 = arith.constant 0 : i32
    %c0_i32_1 = arith.constant 0 : i32
    return %c0_i32, %c0_i32_0 : i32, i32
  }
  func.func @transform_6(%arg0: i32, %arg1: i32) -> i32 {
    %c0_i32 = arith.constant 0 : i32
    %c0_i32_0 = arith.constant 0 : i32
    return %c0_i32 : i32
  }
  func.func @transform_7(%arg0: i32, %arg1: i32) -> (i32, i32, i32, i32) {
    %c0_i32 = arith.constant 0 : i32
    %c0_i32_0 = arith.constant 0 : i32
    %c0_i32_1 = arith.constant 0 : i32
    return %arg0, %c0_i32, %arg1, %c0_i32_0 : i32, i32, i32, i32
  }
}

</mosaic_0001>

<llo_original>
// kernel: tpu_custom_call.1
$region0: #{tpu_custom_call.1}
  #allocation0 [shape = 'u32[]', space=smem, size = 0x4, offset = 0x4, fixed_abs, tag = 'smem constant byte address 0x4 - core index']
  #allocation1 [shape = 'u32[144,128]{1,0:T(1,128)}', space=vmem, size = 0x12000, scoped, tag = 'internal scratch']
  %s0 = inlined_call_operand.hbm [shape: f32[2,8,16,16], index: 0, kind: input, shape index: {}]
  %s1 = inlined_call_operand.vmem [shape: f32[64,16], index: 1, kind: input, shape index: {}]
  %s2 = inlined_call_operand.vmem [shape: f32[16,64], index: 2, kind: input, shape index: {}]
  %s3 = inlined_call_operand.vmem [shape: f32[8,4], index: 3, kind: input, shape index: {}]
  %s4 = inlined_call_operand.vmem [shape: f32[4], index: 4, kind: input, shape index: {}]
  %s5 = inlined_call_operand.vmem [shape: f32[4,4], index: 5, kind: input, shape index: {}]
  %s6 = inlined_call_operand.vmem [shape: f32[4], index: 6, kind: input, shape index: {}]
  %s7 = inlined_call_operand.hbm [shape: f32[2,4,64,64], index: 7, kind: output, shape index: {}]
  %s8 = sld [smem:[#allocation0]]
  $region81: #{tpu_custom_call.1} parent=0
    _
  %s10 = ssub.s32 1, %s8
  %s11 = scalar_select 0, %s10, %s8
  $region1: #{tpu_custom_call.1} parent=0
    #allocation2 [shape = 'u8[131072]{0}', space=vmem, size = 0x20000, scoped, tag = 'input window, operand 0']
    #allocation3 [shape = 's32[2]{0}', space=sflag, size = 0x8, scoped, tag = 'scoped memory for tpu_custom_call.1']
    #allocation4 [shape = 's32[2]{0}', space=sflag, size = 0x8, scoped, tag = 'scoped memory for tpu_custom_call.1']
    #allocation5 [shape = 's32[2]{0}', space=sflag, size = 0x8, scoped, tag = 'scoped memory for tpu_custom_call.1']
    #allocation6 [shape = 'u8[4096]{0}', space=smem, size = 0x1000, scoped, tag = 'input window, operand 3, single buffered']
    #allocation7 [shape = 'u8[512]{0}', space=smem, size = 0x200, scoped, tag = 'input window, operand 4, single buffered']
    #allocation8 [shape = 's32[1]{0}', space=sflag, size = 0x4, scoped, tag = 'scoped memory for tpu_custom_call.1']
    #allocation9 [shape = 'u8[2048]{0}', space=smem, size = 0x800, scoped, tag = 'input window, operand 5, single buffered']
    #allocation10 [shape = 'u8[512]{0}', space=smem, size = 0x200, scoped, tag = 'input window, operand 6, single buffered']
    #allocation11 [shape = 's32[1]{0}', space=sflag, size = 0x4, scoped, tag = 'scoped memory for tpu_custom_call.1']
    #allocation12 [shape = 'u8[262144]{0}', space=vmem, size = 0x40000, scoped, tag = 'output window, operand 0']
    %12 = vsyncpa [#allocation3], 0
    %s13 = scalar_lea.sflag [#allocation3], 1
    %14 = vsyncpa %s13, 0
    %15 = vsyncpa [#allocation5], 0
    %16 = vsyncpa [#allocation8], 0
    %17 = vsyncpa [#allocation11], 0
    %18 = vsyncpa [#allocation4], 0
    %s19 = scalar_lea.sflag [#allocation4], 1
    %20 = vsyncpa %s19, 0
    loop: start=0, step=1, limit=4
    $region2: #{tpu_custom_call.1} parent=1 // loop_pre_header
      _
    $region3: #{tpu_custom_call.1} parent=1 // loop_header
      %s22 = sphi 0, %s26
      %p23 = scmp.ge.s32.totalorder %s22, 4
      %s29 = sphi 0, %s41
      %s30 = sphi 0, %s37
      %s31 = sphi 0, %s29
      %s32 = sphi 0, %s30
      %s33 = sphi 0, %s31
      %s34 = sphi 0, %s32
      %s44 = sphi 0, %s46
      %s47 = sphi 0, %s44
      %s48 = sphi 0, %s47
      %s64 = sphi 0, %s48
      %s70 = sphi 0, %s72
      %s73 = sphi 0, %s70
      %s74 = sphi 0, %s73
      %s90 = sphi 0, %s74
      %s94 = sphi 0, %s94
      %s96 = sphi 0, %s94
      %s97 = sphi 0, %s96
      %s111 = sphi 0, %s97
      %s115 = sphi 0, %s115
      %s117 = sphi 0, %s115
      %s118 = sphi 0, %s117
      %s132 = sphi 0, %s118
      %s136 = sphi 0, %s136
      %s138 = sphi 0, %s136
      %s139 = sphi 0, %s138
      %s153 = sphi 0, %s139
      %s157 = sphi 0, %s157
      %s159 = sphi 0, %s157
      %s160 = sphi 0, %s159
      %s174 = sphi 0, %s160
      %s178 = sphi 0, %s178
      %s180 = sphi 0, %s178
      %s181 = sphi 0, %s180
      %s195 = sphi 0, %s181
      %s203 = sphi 0, %s205
      %s206 = sphi 0, %s203
      %s207 = sphi 0, %s206
      %s223 = sphi 0, %s207
    $region4: #{tpu_custom_call.1} parent=1 // loop_header_branch
      %25 = sbr.rel (%p23) target = $region8
    $region5: #{tpu_custom_call.1} parent=1 // loop_body
      %s27 = ssub.s32 %s22, 1
      %s28 = ssub.s32 %s22, 2
      %s35 = sadd.s32 1, %s30
      %p36 = scmp.ge.s32.totalorder %s35, 1
      %s37 = scalar_select %p36, 0, %s35
      %s38 = sadd.s32 1, %s29
      %s39 = scalar_select %p36, %s38, %s29
      %p40 = scmp.ge.s32.totalorder %s39, 2
      %s41 = scalar_select %p40, 0, %s39
      %s42 = ssub.s32 %s29, %s41
      %p43 = scmp.eq.s32.totalorder %s42, 0
      %s45 = sadd.s32 %s44, 1
      %s46 = scalar_select %p43, %s44, %s45
      %p49 = pneg %p43
      %p50 = scmp.eq.s32.totalorder %s22, 1
      %p51 = por %p49, %p50
      %p52 = scmp.ne.s32.totalorder %s44, %s47
      %p53 = scmp.eq.s32.totalorder %s22, 0
      %p54 = por %p52, %p53
      %p55 = scmp.ne.s32.totalorder %s44, %s47
      %p56 = scmp.eq.s32.totalorder %s27, 1
      %p57 = por %p55, %p56
      %p58 = scmp.ne.s32.totalorder %s47, %s48
      %p59 = scmp.eq.s32.totalorder %s27, 0
      %p60 = por %p58, %p59
      %p61 = scmp.ne.s32.totalorder %s47, %s48
      %p62 = scmp.eq.s32.totalorder %s28, 1
      %p63 = por %p61, %p62
      %p65 = scmp.ne.s32.totalorder %s48, %s64
      %p66 = scmp.eq.s32.totalorder %s28, 0
      %p67 = por %p65, %p66
      %s68 = ssub.s32 %s30, %s37
      %p69 = scmp.eq.s32.totalorder %s68, 0
      %s71 = sadd.s32 %s70, 1
      %s72 = scalar_select %p69, %s70, %s71
      %p75 = pneg %p69
      %p76 = scmp.eq.s32.totalorder %s22, 1
      %p77 = por %p75, %p76
      %p78 = scmp.ne.s32.totalorder %s70, %s73
      %p79 = scmp.eq.s32.totalorder %s22, 0
      %p80 = por %p78, %p79
      %p81 = scmp.ne.s32.totalorder %s70, %s73
      %p82 = scmp.eq.s32.totalorder %s27, 1
      %p83 = por %p81, %p82
      %p84 = scmp.ne.s32.totalorder %s73, %s74
      %p85 = scmp.eq.s32.totalorder %s27, 0
      %p86 = por %p84, %p85
      %p87 = scmp.ne.s32.totalorder %s73, %s74
      %p88 = scmp.eq.s32.totalorder %s28, 1
      %p89 = por %p87, %p88
      %p91 = scmp.ne.s32.totalorder %s74, %s90
      %p92 = scmp.eq.s32.totalorder %s28, 0
      %p93 = por %p91, %p92
      %s95 = sadd.s32 %s94, 1
      %p98 = scmp.eq.s32.totalorder %s22, 1
      %p99 = scmp.ne.s32.totalorder %s94, %s96
      %p100 = scmp.eq.s32.totalorder %s22, 0
      %p101 = por %p99, %p100
      %p102 = scmp.ne.s32.totalorder %s94, %s96
      %p103 = scmp.eq.s32.totalorder %s27, 1
      %p104 = por %p102, %p103
      %p105 = scmp.ne.s32.totalorder %s96, %s97
      %p106 = scmp.eq.s32.totalorder %s27, 0
      %p107 = por %p105, %p106
      %p108 = scmp.ne.s32.totalorder %s96, %s97
      %p109 = scmp.eq.s32.totalorder %s28, 1
      %p110 = por %p108, %p109
      %p112 = scmp.ne.s32.totalorder %s97, %s111
      %p113 = scmp.eq.s32.totalorder %s28, 0
      %p114 = por %p112, %p113
      %s116 = sadd.s32 %s115, 1
      %p119 = scmp.eq.s32.totalorder %s22, 1
      %p120 = scmp.ne.s32.totalorder %s115, %s117
      %p121 = scmp.eq.s32.totalorder %s22, 0
      %p122 = por %p120, %p121
      %p123 = scmp.ne.s32.totalorder %s115, %s117
      %p124 = scmp.eq.s32.totalorder %s27, 1
      %p125 = por %p123, %p124
      %p126 = scmp.ne.s32.totalorder %s117, %s118
      %p127 = scmp.eq.s32.totalorder %s27, 0
      %p128 = por %p126, %p127
      %p129 = scmp.ne.s32.totalorder %s117, %s118
      %p130 = scmp.eq.s32.totalorder %s28, 1
      %p131 = por %p129, %p130
      %p133 = scmp.ne.s32.totalorder %s118, %s132
      %p134 = scmp.eq.s32.totalorder %s28, 0
      %p135 = por %p133, %p134
      %s137 = sadd.s32 %s136, 1
      %p140 = scmp.eq.s32.totalorder %s22, 1
      %p141 = scmp.ne.s32.totalorder %s136, %s138
      %p142 = scmp.eq.s32.totalorder %s22, 0
      %p143 = por %p141, %p142
      %p144 = scmp.ne.s32.totalorder %s136, %s138
      %p145 = scmp.eq.s32.totalorder %s27, 1
      %p146 = por %p144, %p145
      %p147 = scmp.ne.s32.totalorder %s138, %s139
      %p148 = scmp.eq.s32.totalorder %s27, 0
      %p149 = por %p147, %p148
      %p150 = scmp.ne.s32.totalorder %s138, %s139
      %p151 = scmp.eq.s32.totalorder %s28, 1
      %p152 = por %p150, %p151
      %p154 = scmp.ne.s32.totalorder %s139, %s153
      %p155 = scmp.eq.s32.totalorder %s28, 0
      %p156 = por %p154, %p155
      %s158 = sadd.s32 %s157, 1
      %p161 = scmp.eq.s32.totalorder %s22, 1
      %p162 = scmp.ne.s32.totalorder %s157, %s159
      %p163 = scmp.eq.s32.totalorder %s22, 0
      %p164 = por %p162, %p163
      %p165 = scmp.ne.s32.totalorder %s157, %s159
      %p166 = scmp.eq.s32.totalorder %s27, 1
      %p167 = por %p165, %p166
      %p168 = scmp.ne.s32.totalorder %s159, %s160
      %p169 = scmp.eq.s32.totalorder %s27, 0
      %p170 = por %p168, %p169
      %p171 = scmp.ne.s32.totalorder %s159, %s160
      %p172 = scmp.eq.s32.totalorder %s28, 1
      %p173 = por %p171, %p172
      %p175 = scmp.ne.s32.totalorder %s160, %s174
      %p176 = scmp.eq.s32.totalorder %s28, 0
      %p177 = por %p175, %p176
      %s179 = sadd.s32 %s178, 1
      %p182 = scmp.eq.s32.totalorder %s22, 1
      %p183 = scmp.ne.s32.totalorder %s178, %s180
      %p184 = scmp.eq.s32.totalorder %s22, 0
      %p185 = por %p183, %p184
      %p186 = scmp.ne.s32.totalorder %s178, %s180
      %p187 = scmp.eq.s32.totalorder %s27, 1
      %p188 = por %p186, %p187
      %p189 = scmp.ne.s32.totalorder %s180, %s181
      %p190 = scmp.eq.s32.totalorder %s27, 0
      %p191 = por %p189, %p190
      %p192 = scmp.ne.s32.totalorder %s180, %s181
      %p193 = scmp.eq.s32.totalorder %s28, 1
      %p194 = por %p192, %p193
      %p196 = scmp.ne.s32.totalorder %s181, %s195
      %p197 = scmp.eq.s32.totalorder %s28, 0
      %p198 = por %p196, %p197
      %s199 = ssub.s32 %s29, %s41
      %s200 = ssub.s32 %s30, %s37
      %s201 = sor.u32 %s199, %s200
      %p202 = scmp.eq.s32.totalorder %s201, 0
      %s204 = sadd.s32 %s203, 1
      %s205 = scalar_select %p202, %s203, %s204
      %p208 = pneg %p202
      %p209 = scmp.eq.s32.totalorder %s22, 1
      %p210 = por %p208, %p209
      %p211 = scmp.ne.s32.totalorder %s203, %s206
      %p212 = scmp.eq.s32.totalorder %s22, 0
      %p213 = por %p211, %p212
      %p214 = scmp.ne.s32.totalorder %s203, %s206
      %p215 = scmp.eq.s32.totalorder %s27, 1
      %p216 = por %p214, %p215
      %p217 = scmp.ne.s32.totalorder %s206, %s207
      %p218 = scmp.eq.s32.totalorder %s27, 0
      %p219 = por %p217, %p218
      %p220 = scmp.ne.s32.totalorder %s206, %s207
      %p221 = scmp.eq.s32.totalorder %s28, 1
      %p222 = por %p220, %p221
      %p224 = scmp.ne.s32.totalorder %s207, %s223
      %p225 = scmp.eq.s32.totalorder %s28, 0
      %p226 = por %p224, %p225
      %p227 = scmp.le.s32.totalorder 1, %s22
      %p228 = scmp.lt.s32.totalorder %s22, 3
      %p229 = pnand %p227, %p228
      %p230 = pneg %p229
      // Predicated region
      $region9: #{tpu_custom_call.1} parent=5 // pred_check
        _
      $region10: #{tpu_custom_call.1} parent=5 // pred_check_branch
        %232 = sbr.rel (%p229) target = $region12
      $region11: #{tpu_custom_call.1} parent=5 // pred_region
        %s233 = ssub.s32 %s22, 1
        // Predicated region
        $region13: #{tpu_custom_call.1} parent=11 // pred_check
          %p234 = pneg %p86
        $region14: #{tpu_custom_call.1} parent=11 // pred_check_branch
          %236 = sbr.rel (%p234) target = $region16
        $region15: #{tpu_custom_call.1} parent=11 // pred_region
          %s237 = smul.u32 8, %s32
          %p238 = scmp.lt.s32.totalorder %s237, 7
          %s239 = scalar_select %p238, %s237, 7
          %s240 = smul.addr %s239, 8
          %s241 = scalar_lea.vmem %s1, %s240
          %s242 = smul.u32 8, %s32
        $region16: #{tpu_custom_call.1} parent=11 // pred_fallthru
          _
        // Predicated region
        $region17: #{tpu_custom_call.1} parent=11 // pred_check
          %p243 = pneg %p107
        $region18: #{tpu_custom_call.1} parent=11 // pred_check_branch
          %245 = sbr.rel (%p243) target = $region20
        $region19: #{tpu_custom_call.1} parent=11 // pred_region
          _
        $region20: #{tpu_custom_call.1} parent=11 // pred_fallthru
          _
        // Predicated region
        $region21: #{tpu_custom_call.1} parent=11 // pred_check
          %p246 = pneg %p128
        $region22: #{tpu_custom_call.1} parent=11 // pred_check_branch
          %248 = sbr.rel (%p246) target = $region24
        $region23: #{tpu_custom_call.1} parent=11 // pred_region
          %s250 = ssub.s32 128, 128
          %251 = vsyncadd [#allocation5], %s250
          %s253 = sshll.u32 %s3, 4
          %s254 = int_to_ptr.vmem [resolvable:$true] %s253
          %256 = dma.vmem_to_smem %s254, 128, [#allocation6], [#allocation5]
        $region24: #{tpu_custom_call.1} parent=11 // pred_fallthru
          _
        // Predicated region
        $region25: #{tpu_custom_call.1} parent=11 // pred_check
          %p257 = pneg %p149
        $region26: #{tpu_custom_call.1} parent=11 // pred_check_branch
          %259 = sbr.rel (%p257) target = $region28
        $region27: #{tpu_custom_call.1} parent=11 // pred_region
          %s261 = ssub.s32 16, 16
          %262 = vsyncadd [#allocation8], %s261
          %s264 = sshll.u32 %s4, 4
          %s265 = int_to_ptr.vmem [resolvable:$true] %s264
          %267 = dma.vmem_to_smem %s265, 16, [#allocation7], [#allocation8]
        $region28: #{tpu_custom_call.1} parent=11 // pred_fallthru
          _
        // Predicated region
        $region29: #{tpu_custom_call.1} parent=11 // pred_check
          %p268 = pneg %p170
        $region30: #{tpu_custom_call.1} parent=11 // pred_check_branch
          %270 = sbr.rel (%p268) target = $region32
        $region31: #{tpu_custom_call.1} parent=11 // pred_region
          %s272 = ssub.s32 64, 64
          %273 = vsyncadd [#allocation8], %s272
          %s275 = sshll.u32 %s5, 4
          %s276 = int_to_ptr.vmem [resolvable:$true] %s275
          %278 = dma.vmem_to_smem %s276, 64, [#allocation9], [#allocation8]
        $region32: #{tpu_custom_call.1} parent=11 // pred_fallthru
          _
        // Predicated region
        $region33: #{tpu_custom_call.1} parent=11 // pred_check
          %p279 = pneg %p191
        $region34: #{tpu_custom_call.1} parent=11 // pred_check_branch
          %281 = sbr.rel (%p279) target = $region36
        $region35: #{tpu_custom_call.1} parent=11 // pred_region
          %s283 = ssub.s32 16, 16
          %284 = vsyncadd [#allocation11], %s283
          %s286 = sshll.u32 %s6, 4
          %s287 = int_to_ptr.vmem [resolvable:$true] %s286
          %289 = dma.vmem_to_smem %s287, 16, [#allocation10], [#allocation11]
        $region36: #{tpu_custom_call.1} parent=11 // pred_fallthru
          _
      $region12: #{tpu_custom_call.1} parent=5 // pred_fallthru
        _
      %p290 = scmp.lt.s32.totalorder %s22, 2
      // Predicated region
      $region37: #{tpu_custom_call.1} parent=5 // pred_check
        %p291 = pneg %p290
      $region38: #{tpu_custom_call.1} parent=5 // pred_check_branch
        %293 = sbr.rel (%p291) target = $region40
      $region39: #{tpu_custom_call.1} parent=5 // pred_region
        // Predicated region
        $region41: #{tpu_custom_call.1} parent=39 // pred_check
          %p294 = pneg %p54
        $region42: #{tpu_custom_call.1} parent=39 // pred_check_branch
          %296 = sbr.rel (%p294) target = $region44
        $region43: #{tpu_custom_call.1} parent=39 // pred_region
          %s297 = sand.u32 %s44, 1
          %s298 = scalar_lea.sflag [#allocation3], %s297
          %s299 = sand.u32 %s44, 1
          %s300 = smul.addr %s299, 128
          %s301 = scalar_lea.vmem [#allocation2], %s300
          %s303 = ssub.s32 2048, 2048
          %304 = vsyncadd %s298, %s303
          %s305 = smul.addr %s29, 16
          %s306 = smul.addr %s305, 128
          %s307 = scalar_lea.hbm %s0, %s306
          %s308 = sshll.u32 %s301, 4
          %s309 = int_to_ptr.vmem [resolvable:$true] %s308
          %314 = dma.hbm_to_vmem [thread:$0]  %s307, 2048, %s309, %s298, 128, 128, 8
        $region44: #{tpu_custom_call.1} parent=39 // pred_fallthru
          _
      $region40: #{tpu_custom_call.1} parent=5 // pred_fallthru
        _
      %p315 = scmp.le.s32.totalorder 1, %s22
      %p316 = scmp.lt.s32.totalorder %s22, 3
      %p317 = pnand %p315, %p316
      %p318 = pneg %p317
      // Predicated region
      $region45: #{tpu_custom_call.1} parent=5 // pred_check
        _
      $region46: #{tpu_custom_call.1} parent=5 // pred_check_branch
        %320 = sbr.rel (%p317) target = $region48
      $region47: #{tpu_custom_call.1} parent=5 // pred_region
        %s321 = ssub.s32 %s22, 1
        %s322 = sand.u32 %s47, 1
        %s323 = scalar_lea.sflag [#allocation3], %s322
        %s324 = sand.u32 %s47, 1
        %s325 = smul.addr %s324, 128
        %s326 = scalar_lea.vmem [#allocation2], %s325
        // Predicated region
        $region49: #{tpu_custom_call.1} parent=47 // pred_check
          %p327 = pneg %p60
        $region50: #{tpu_custom_call.1} parent=47 // pred_check_branch
          %329 = sbr.rel (%p327) target = $region52
        $region51: #{tpu_custom_call.1} parent=47 // pred_region
          %330 = dma.done %s323, 2048
        $region52: #{tpu_custom_call.1} parent=47 // pred_fallthru
          _
        // Predicated region
        $region53: #{tpu_custom_call.1} parent=47 // pred_check
          %p331 = pneg %p128
        $region54: #{tpu_custom_call.1} parent=47 // pred_check_branch
          %333 = sbr.rel (%p331) target = $region56
        $region55: #{tpu_custom_call.1} parent=47 // pred_region
          %334 = dma.done [#allocation5], 128
        $region56: #{tpu_custom_call.1} parent=47 // pred_fallthru
          _
        // Predicated region
        $region57: #{tpu_custom_call.1} parent=47 // pred_check
          %p335 = pneg %p149
        $region58: #{tpu_custom_call.1} parent=47 // pred_check_branch
          %337 = sbr.rel (%p335) target = $region60
        $region59: #{tpu_custom_call.1} parent=47 // pred_region
          %338 = dma.done [#allocation8], 16
        $region60: #{tpu_custom_call.1} parent=47 // pred_fallthru
          _
        // Predicated region
        $region61: #{tpu_custom_call.1} parent=47 // pred_check
          %p339 = pneg %p170
        $region62: #{tpu_custom_call.1} parent=47 // pred_check_branch
          %341 = sbr.rel (%p339) target = $region64
        $region63: #{tpu_custom_call.1} parent=47 // pred_region
          %342 = dma.done [#allocation8], 64
        $region64: #{tpu_custom_call.1} parent=47 // pred_fallthru
          _
        // Predicated region
        $region65: #{tpu_custom_call.1} parent=47 // pred_check
          %p343 = pneg %p191
        $region66: #{tpu_custom_call.1} parent=47 // pred_check_branch
          %345 = sbr.rel (%p343) target = $region68
        $region67: #{tpu_custom_call.1} parent=47 // pred_region
          %346 = dma.done [#allocation11], 16
        $region68: #{tpu_custom_call.1} parent=47 // pred_fallthru
          _
        %347 = sfence
        %s348 = sand.u32 %s47, 1
        %s349 = scalar_lea.sflag [#allocation3], %s348
        %s350 = sand.u32 %s47, 1
        %s351 = smul.addr %s350, 128
        %s352 = scalar_lea.vmem [#allocation2], %s351
        %p353 = pneg %p60
        %p354 = pneg %p57
        %s355 = smul.u32 8, %s32
        %p356 = scmp.lt.s32.totalorder %s355, 7
        %s357 = scalar_select %p356, %s355, 7
        %s358 = smul.addr %s357, 8
        %s359 = scalar_lea.vmem %s1, %s358
        %p360 = pneg %p86
        %p361 = pneg %p83
        %p362 = pneg %p107
        %p363 = pneg %p104
        %p364 = pneg %p128
        %p365 = pneg %p125
        %p366 = pneg %p149
        %p367 = pneg %p146
        %p368 = pneg %p170
        %p369 = pneg %p167
        %p370 = pneg %p191
        %p371 = pneg %p188
        %p372 = pneg %p219
        %p373 = pneg %p216
        %s374 = sand.u32 %s206, 1
        %s375 = scalar_lea.sflag [#allocation4], %s374
        %s376 = sand.u32 %s206, 1
        %s377 = smul.addr %s376, 256
        %s378 = scalar_lea.vmem [#allocation12], %s377
        %s379 = smul.u32 8, %s32
        %p380 = scmp.lt.s32.totalorder %s379, 7
        %s381 = scalar_select %p380, %s379, 7
        %s382 = smul.addr %s381, 8
        %s383 = scalar_lea.vmem %s1, %s382
        %s384 = smul.u32 8, %s32
        %s385 = smul.u32 8, %s32
        %v386 = vld [vmem:[%s326] sm:$0xff]
        %v387 = vld [vmem:[%s326 + $0x8] sm:$0xff]
        %s388 = scalar_lea.vmem %s326, 16 [#allocation2]
        %v389 = vld [vmem:[%s388] sm:$0xff]
        %v390 = vld [vmem:[%s388 + $0x8] sm:$0xff]
        %s391 = scalar_lea.vmem %s326, 32 [#allocation2]
        %v392 = vld [vmem:[%s391] sm:$0xff]
        %v393 = vld [vmem:[%s391 + $0x8] sm:$0xff]
        %s394 = scalar_lea.vmem %s326, 48 [#allocation2]
        %v395 = vld [vmem:[%s394] sm:$0xff]
        %v396 = vld [vmem:[%s394 + $0x8] sm:$0xff]
        %s397 = scalar_lea.vmem %s326, 64 [#allocation2]
        %v398 = vld [vmem:[%s397] sm:$0xff]
        %v399 = vld [vmem:[%s397 + $0x8] sm:$0xff]
        %s400 = scalar_lea.vmem %s326, 80 [#allocation2]
        %v401 = vld [vmem:[%s400] sm:$0xff]
        %v402 = vld [vmem:[%s400 + $0x8] sm:$0xff]
        %s403 = scalar_lea.vmem %s326, 96 [#allocation2]
        %v404 = vld [vmem:[%s403] sm:$0xff]
        %v405 = vld [vmem:[%s403 + $0x8] sm:$0xff]
        %s406 = scalar_lea.vmem %s326, 112 [#allocation2]
        %v407 = vld [vmem:[%s406] sm:$0xff]
        %v408 = vld [vmem:[%s406 + $0x8] sm:$0xff]
        %s409 = sld [smem:[#allocation6]]
        %v410 = vstv %s409
        %v411 = vmul.f32 %v386, %v410
        %v412 = vmul.f32 %v387, %v410
        %s413 = sld [smem:[#allocation6 + $0x80]]
        %v414 = vstv %s413
        %v415 = vmul.f32 %v389, %v414
        %v416 = vmul.f32 %v390, %v414
        %v417 = vadd.f32 %v411, %v415
        %v418 = vadd.f32 %v412, %v416
        %s419 = sld [smem:[#allocation6 + $0x100]]
        %v420 = vstv %s419
        %v421 = vmul.f32 %v392, %v420
        %v422 = vmul.f32 %v393, %v420
        %v423 = vadd.f32 %v417, %v421
        %v424 = vadd.f32 %v418, %v422
        %s425 = sld [smem:[#allocation6 + $0x180]]
        %v426 = vstv %s425
        %v427 = vmul.f32 %v395, %v426
        %v428 = vmul.f32 %v396, %v426
        %v429 = vadd.f32 %v423, %v427
        %v430 = vadd.f32 %v424, %v428
        %s431 = sld [smem:[#allocation6 + $0x200]]
        %v432 = vstv %s431
        %v433 = vmul.f32 %v398, %v432
        %v434 = vmul.f32 %v399, %v432
        %v435 = vadd.f32 %v429, %v433
        %v436 = vadd.f32 %v430, %v434
        %s437 = sld [smem:[#allocation6 + $0x280]]
        %v438 = vstv %s437
        %v439 = vmul.f32 %v401, %v438
        %v440 = vmul.f32 %v402, %v438
        %v441 = vadd.f32 %v435, %v439
        %v442 = vadd.f32 %v436, %v440
        %s443 = sld [smem:[#allocation6 + $0x300]]
        %v444 = vstv %s443
        %v445 = vmul.f32 %v404, %v444
        %v446 = vmul.f32 %v405, %v444
        %v447 = vadd.f32 %v441, %v445
        %v448 = vadd.f32 %v442, %v446
        %s449 = sld [smem:[#allocation6 + $0x380]]
        %v450 = vstv %s449
        %v451 = vmul.f32 %v407, %v450
        %v452 = vmul.f32 %v408, %v450
        %v453 = vadd.f32 %v447, %v451
        %v454 = vadd.f32 %v448, %v452
        %s455 = sld [smem:[#allocation7]]
        %v456 = vstv %s455
        %v457 = vadd.f32 %v453, %v456
        %v458 = vadd.f32 %v454, %v456
        %vm459 = vcmp.ge.f32.partialorder %v457, 0.0
        %vm460 = vcmp.ge.f32.partialorder %v458, 0.0
        %v461 = vmul.f32 %v457, 0.2
        %v462 = vmul.f32 %v458, 0.2
        %v463 = vsel %vm459, %v457, %v461
        %v464 = vsel %vm460, %v458, %v462
        %s465 = sld [smem:[#allocation6 + $0x1]]
        %v466 = vstv %s465
        %v467 = vmul.f32 %v386, %v466
        %v468 = vmul.f32 %v387, %v466
        %s469 = sld [smem:[#allocation6 + $0x81]]
        %v470 = vstv %s469
        %v471 = vmul.f32 %v389, %v470
        %v472 = vmul.f32 %v390, %v470
        %v473 = vadd.f32 %v467, %v471
        %v474 = vadd.f32 %v468, %v472
        %s475 = sld [smem:[#allocation6 + $0x101]]
        %v476 = vstv %s475
        %v477 = vmul.f32 %v392, %v476
        %v478 = vmul.f32 %v393, %v476
        %v479 = vadd.f32 %v473, %v477
        %v480 = vadd.f32 %v474, %v478
        %s481 = sld [smem:[#allocation6 + $0x181]]
        %v482 = vstv %s481
        %v483 = vmul.f32 %v395, %v482
        %v484 = vmul.f32 %v396, %v482
        %v485 = vadd.f32 %v479, %v483
        %v486 = vadd.f32 %v480, %v484
        %s487 = sld [smem:[#allocation6 + $0x201]]
        %v488 = vstv %s487
        %v489 = vmul.f32 %v398, %v488
        %v490 = vmul.f32 %v399, %v488
        %v491 = vadd.f32 %v485, %v489
        %v492 = vadd.f32 %v486, %v490
        %s493 = sld [smem:[#allocation6 + $0x281]]
        %v494 = vstv %s493
        %v495 = vmul.f32 %v401, %v494
        %v496 = vmul.f32 %v402, %v494
        %v497 = vadd.f32 %v491, %v495
        %v498 = vadd.f32 %v492, %v496
        %s499 = sld [smem:[#allocation6 + $0x301]]
        %v500 = vstv %s499
        %v501 = vmul.f32 %v404, %v500
        %v502 = vmul.f32 %v405, %v500
        %v503 = vadd.f32 %v497, %v501
        %v504 = vadd.f32 %v498, %v502
        %s505 = sld [smem:[#allocation6 + $0x381]]
        %v506 = vstv %s505
        %v507 = vmul.f32 %v407, %v506
        %v508 = vmul.f32 %v408, %v506
        %v509 = vadd.f32 %v503, %v507
        %v510 = vadd.f32 %v504, %v508
        %s511 = sld [smem:[#allocation7 + $0x1]]
        %v512 = vstv %s511
        %v513 = vadd.f32 %v509, %v512
        %v514 = vadd.f32 %v510, %v512
        %vm515 = vcmp.ge.f32.partialorder %v513, 0.0
        %vm516 = vcmp.ge.f32.partialorder %v514, 0.0
        %v517 = vmul.f32 %v513, 0.2
        %v518 = vmul.f32 %v514, 0.2
        %v519 = vsel %vm515, %v513, %v517
        %v520 = vsel %vm516, %v514, %v518
        %s521 = sld [smem:[#allocation6 + $0x2]]
        %v522 = vstv %s521
        %v523 = vmul.f32 %v386, %v522
        %v524 = vmul.f32 %v387, %v522
        %s525 = sld [smem:[#allocation6 + $0x82]]
        %v526 = vstv %s525
        %v527 = vmul.f32 %v389, %v526
        %v528 = vmul.f32 %v390, %v526
        %v529 = vadd.f32 %v523, %v527
        %v530 = vadd.f32 %v524, %v528
        %s531 = sld [smem:[#allocation6 + $0x102]]
        %v532 = vstv %s531
        %v533 = vmul.f32 %v392, %v532
        %v534 = vmul.f32 %v393, %v532
        %v535 = vadd.f32 %v529, %v533
        %v536 = vadd.f32 %v530, %v534
        %s537 = sld [smem:[#allocation6 + $0x182]]
        %v538 = vstv %s537
        %v539 = vmul.f32 %v395, %v538
        %v540 = vmul.f32 %v396, %v538
        %v541 = vadd.f32 %v535, %v539
        %v542 = vadd.f32 %v536, %v540
        %s543 = sld [smem:[#allocation6 + $0x202]]
        %v544 = vstv %s543
        %v545 = vmul.f32 %v398, %v544
        %v546 = vmul.f32 %v399, %v544
        %v547 = vadd.f32 %v541, %v545
        %v548 = vadd.f32 %v542, %v546
        %s549 = sld [smem:[#allocation6 + $0x282]]
        %v550 = vstv %s549
        %v551 = vmul.f32 %v401, %v550
        %v552 = vmul.f32 %v402, %v550
        %v553 = vadd.f32 %v547, %v551
        %v554 = vadd.f32 %v548, %v552
        %s555 = sld [smem:[#allocation6 + $0x302]]
        %v556 = vstv %s555
        %v557 = vmul.f32 %v404, %v556
        %v558 = vmul.f32 %v405, %v556
        %v559 = vadd.f32 %v553, %v557
        %v560 = vadd.f32 %v554, %v558
        %s561 = sld [smem:[#allocation6 + $0x382]]
        %v562 = vstv %s561
        %v563 = vmul.f32 %v407, %v562
        %v564 = vmul.f32 %v408, %v562
        %v565 = vadd.f32 %v559, %v563
        %v566 = vadd.f32 %v560, %v564
        %s567 = sld [smem:[#allocation7 + $0x2]]
        %v568 = vstv %s567
        %v569 = vadd.f32 %v565, %v568
        %v570 = vadd.f32 %v566, %v568
        %vm571 = vcmp.ge.f32.partialorder %v569, 0.0
        %vm572 = vcmp.ge.f32.partialorder %v570, 0.0
        %v573 = vmul.f32 %v569, 0.2
        %v574 = vmul.f32 %v570, 0.2
        %v575 = vsel %vm571, %v569, %v573
        %v576 = vsel %vm572, %v570, %v574
        %s577 = sld [smem:[#allocation6 + $0x3]]
        %v578 = vstv %s577
        %v579 = vmul.f32 %v386, %v578
        %v580 = vmul.f32 %v387, %v578
        %s581 = sld [smem:[#allocation6 + $0x83]]
        %v582 = vstv %s581
        %v583 = vmul.f32 %v389, %v582
        %v584 = vmul.f32 %v390, %v582
        %v585 = vadd.f32 %v579, %v583
        %v586 = vadd.f32 %v580, %v584
        %s587 = sld [smem:[#allocation6 + $0x103]]
        %v588 = vstv %s587
        %v589 = vmul.f32 %v392, %v588
        %v590 = vmul.f32 %v393, %v588
        %v591 = vadd.f32 %v585, %v589
        %v592 = vadd.f32 %v586, %v590
        %s593 = sld [smem:[#allocation6 + $0x183]]
        %v594 = vstv %s593
        %v595 = vmul.f32 %v395, %v594
        %v596 = vmul.f32 %v396, %v594
        %v597 = vadd.f32 %v591, %v595
        %v598 = vadd.f32 %v592, %v596
        %s599 = sld [smem:[#allocation6 + $0x203]]
        %v600 = vstv %s599
        %v601 = vmul.f32 %v398, %v600
        %v602 = vmul.f32 %v399, %v600
        %v603 = vadd.f32 %v597, %v601
        %v604 = vadd.f32 %v598, %v602
        %s605 = sld [smem:[#allocation6 + $0x283]]
        %v606 = vstv %s605
        %v607 = vmul.f32 %v401, %v606
        %v608 = vmul.f32 %v402, %v606
        %v609 = vadd.f32 %v603, %v607
        %v610 = vadd.f32 %v604, %v608
        %s611 = sld [smem:[#allocation6 + $0x303]]
        %v612 = vstv %s611
        %v613 = vmul.f32 %v404, %v612
        %v614 = vmul.f32 %v405, %v612
        %v615 = vadd.f32 %v609, %v613
        %v616 = vadd.f32 %v610, %v614
        %s617 = sld [smem:[#allocation6 + $0x383]]
        %v618 = vstv %s617
        %v619 = vmul.f32 %v407, %v618
        %v620 = vmul.f32 %v408, %v618
        %v621 = vadd.f32 %v615, %v619
        %v622 = vadd.f32 %v616, %v620
        %s623 = sld [smem:[#allocation7 + $0x3]]
        %v624 = vstv %s623
        %v625 = vadd.f32 %v621, %v624
        %v626 = vadd.f32 %v622, %v624
        %vm627 = vcmp.ge.f32.partialorder %v625, 0.0
        %vm628 = vcmp.ge.f32.partialorder %v626, 0.0
        %v629 = vmul.f32 %v625, 0.2
        %v630 = vmul.f32 %v626, 0.2
        %v631 = vsel %vm627, %v625, %v629
        %v632 = vsel %vm628, %v626, %v630
        %s633 = sld [smem:[#allocation9]]
        %v634 = vstv %s633
        %v635 = vmul.f32 %v463, %v634
        %v636 = vmul.f32 %v464, %v634
        %s637 = sld [smem:[#allocation9 + $0x80]]
        %v638 = vstv %s637
        %v639 = vmul.f32 %v519, %v638
        %v640 = vmul.f32 %v520, %v638
        %v641 = vadd.f32 %v635, %v639
        %v642 = vadd.f32 %v636, %v640
        %s643 = sld [smem:[#allocation9 + $0x100]]
        %v644 = vstv %s643
        %v645 = vmul.f32 %v575, %v644
        %v646 = vmul.f32 %v576, %v644
        %v647 = vadd.f32 %v641, %v645
        %v648 = vadd.f32 %v642, %v646
        %s649 = sld [smem:[#allocation9 + $0x180]]
        %v650 = vstv %s649
        %v651 = vmul.f32 %v631, %v650
        %v652 = vmul.f32 %v632, %v650
        %v653 = vadd.f32 %v647, %v651
        %v654 = vadd.f32 %v648, %v652
        %s655 = sld [smem:[#allocation10]]
        %v656 = vstv %s655
        %v657 = vadd.f32 %v653, %v656
        %v658 = vadd.f32 %v654, %v656
        %s659 = sld [smem:[#allocation9 + $0x1]]
        %v660 = vstv %s659
        %v661 = vmul.f32 %v463, %v660
        %v662 = vmul.f32 %v464, %v660
        %s663 = sld [smem:[#allocation9 + $0x81]]
        %v664 = vstv %s663
        %v665 = vmul.f32 %v519, %v664
        %v666 = vmul.f32 %v520, %v664
        %v667 = vadd.f32 %v661, %v665
        %v668 = vadd.f32 %v662, %v666
        %s669 = sld [smem:[#allocation9 + $0x101]]
        %v670 = vstv %s669
        %v671 = vmul.f32 %v575, %v670
        %v672 = vmul.f32 %v576, %v670
        %v673 = vadd.f32 %v667, %v671
        %v674 = vadd.f32 %v668, %v672
        %s675 = sld [smem:[#allocation9 + $0x181]]
        %v676 = vstv %s675
        %v677 = vmul.f32 %v631, %v676
        %v678 = vmul.f32 %v632, %v676
        %v679 = vadd.f32 %v673, %v677
        %v680 = vadd.f32 %v674, %v678
        %s681 = sld [smem:[#allocation10 + $0x1]]
        %v682 = vstv %s681
        %v683 = vadd.f32 %v679, %v682
        %v684 = vadd.f32 %v680, %v682
        %s685 = sld [smem:[#allocation9 + $0x2]]
        %v686 = vstv %s685
        %v687 = vmul.f32 %v463, %v686
        %v688 = vmul.f32 %v464, %v686
        %s689 = sld [smem:[#allocation9 + $0x82]]
        %v690 = vstv %s689
        %v691 = vmul.f32 %v519, %v690
        %v692 = vmul.f32 %v520, %v690
        %v693 = vadd.f32 %v687, %v691
        %v694 = vadd.f32 %v688, %v692
        %s695 = sld [smem:[#allocation9 + $0x102]]
        %v696 = vstv %s695
        %v697 = vmul.f32 %v575, %v696
        %v698 = vmul.f32 %v576, %v696
        %v699 = vadd.f32 %v693, %v697
        %v700 = vadd.f32 %v694, %v698
        %s701 = sld [smem:[#allocation9 + $0x182]]
        %v702 = vstv %s701
        %v703 = vmul.f32 %v631, %v702
        %v704 = vmul.f32 %v632, %v702
        %v705 = vadd.f32 %v699, %v703
        %v706 = vadd.f32 %v700, %v704
        %s707 = sld [smem:[#allocation10 + $0x2]]
        %v708 = vstv %s707
        %v709 = vadd.f32 %v705, %v708
        %v710 = vadd.f32 %v706, %v708
        %s711 = sld [smem:[#allocation9 + $0x3]]
        %v712 = vstv %s711
        %v713 = vmul.f32 %v463, %v712
        %v714 = vmul.f32 %v464, %v712
        %s715 = sld [smem:[#allocation9 + $0x83]]
        %v716 = vstv %s715
        %v717 = vmul.f32 %v519, %v716
        %v718 = vmul.f32 %v520, %v716
        %v719 = vadd.f32 %v713, %v717
        %v720 = vadd.f32 %v714, %v718
        %s721 = sld [smem:[#allocation9 + $0x103]]
        %v722 = vstv %s721
        %v723 = vmul.f32 %v575, %v722
        %v724 = vmul.f32 %v576, %v722
        %v725 = vadd.f32 %v719, %v723
        %v726 = vadd.f32 %v720, %v724
        %s727 = sld [smem:[#allocation9 + $0x183]]
        %v728 = vstv %s727
        %v729 = vmul.f32 %v631, %v728
        %v730 = vmul.f32 %v632, %v728
        %v731 = vadd.f32 %v725, %v729
        %v732 = vadd.f32 %v726, %v730
        %s733 = sld [smem:[#allocation10 + $0x3]]
        %v734 = vstv %s733
        %v735 = vadd.f32 %v731, %v734
        %v736 = vadd.f32 %v732, %v734
        %v737 = vld [vmem:[%s2] sm:$0xff]
        %v738 = vld [vmem:[%s2 + $0x8] sm:$0xff]
        %vm739 = vcmask 130048
        %v741 = vsel %vm739, %v657, 0
        %v744 = vsel %vm739, %v658, 0
        %v747 = vsel %vm739, %v683, 0
        %v750 = vsel %vm739, %v684, 0
        %v753 = vsel %vm739, %v709, 0
        %v756 = vsel %vm739, %v710, 0
        %v759 = vsel %vm739, %v735, 0
        %v762 = vsel %vm739, %v736, 0
        %764 = vmatprep.subr.mxu0 0.0
        %765 = vmatpush1.msra.mxu0 %v737
        %766 = vmatprep.subr.mxu0 0.0
        %767 = vmatpush1.msra.mxu0 %v738
        %768 = vmatprep.subr.mxu0 0.0
        %769 = vmatpush1.msra.mxu0 0.0
        %770 = vmatprep.subr.mxu0 0.0
        %771 = vmatpush1.msra.mxu0 0.0
        %772 = vmatprep.subr.mxu0 0.0
        %773 = vmatpush1.msra.mxu0 0.0
        %774 = vmatprep.subr.mxu0 0.0
        %775 = vmatpush1.msra.mxu0 0.0
        %776 = vmatprep.subr.mxu0 0.0
        %777 = vmatpush1.msra.mxu0 0.0
        %778 = vmatprep.subr.mxu0 0.0
        %779 = vmatpush1.msra.mxu0 0.0
        %780 = vmatprep.subr.mxu0 0.0
        %781 = vmatpush1.msra.mxu0 0.0
        %782 = vmatprep.subr.mxu0 0.0
        %783 = vmatpush1.msra.mxu0 0.0
        %784 = vmatprep.subr.mxu0 0.0
        %785 = vmatpush1.msra.mxu0 0.0
        %786 = vmatprep.subr.mxu0 0.0
        %787 = vmatpush1.msra.mxu0 0.0
        %788 = vmatprep.subr.mxu0 0.0
        %789 = vmatpush1.msra.mxu0 0.0
        %790 = vmatprep.subr.mxu0 0.0
        %791 = vmatpush1.msra.mxu0 0.0
        %792 = vmatprep.subr.mxu0 0.0
        %793 = vmatpush1.msra.mxu0 0.0
        %794 = vmatprep.subr.mxu0 0.0
        %795 = vmatpush1.msra.mxu0 0.0
        %796 = vmatprep.subr.mxu0 0.0
        %797 = vmatpush1.msra.mxu0 0.0
        %798 = vmatprep.subr.mxu0 0.0
        %799 = vmatpush1.msra.mxu0 0.0
        %800 = vmatprep.subr.mxu0 0.0
        %801 = vmatpush1.msra.mxu0 0.0
        %802 = vmatprep.subr.mxu0 0.0
        %803 = vmatpush1.msra.mxu0 0.0
        %804 = vmatprep.subr.mxu0 0.0
        %805 = vmatpush1.msra.mxu0 0.0
        %806 = vmatprep.subr.mxu0 0.0
        %807 = vmatpush1.msra.mxu0 0.0
        %808 = vmatprep.subr.mxu0 0.0
        %809 = vmatpush1.msra.mxu0 0.0
        %810 = vmatprep.subr.mxu0 0.0
        %811 = vmatpush1.msra.mxu0 0.0
        %812 = vmatprep.subr.mxu0 0.0
        %813 = vmatpush1.msra.mxu0 0.0
        %814 = vmatprep.subr.mxu0 0.0
        %815 = vmatpush1.msra.mxu0 0.0
        %816 = vmatprep.subr.mxu0 0.0
        %817 = vmatpush1.msra.mxu0 0.0
        %818 = vmatprep.subr.mxu0 0.0
        %819 = vmatpush1.msra.mxu0 0.0
        %820 = vmatprep.subr.mxu0 0.0
        %821 = vmatpush1.msra.mxu0 0.0
        %822 = vmatprep.subr.mxu0 0.0
        %823 = vmatpush1.msra.mxu0 0.0
        %824 = vmatprep.subr.mxu0 0.0
        %825 = vmatpush1.msra.mxu0 0.0
        %826 = vmatprep.subr.mxu0 0.0
        %827 = vmatpush1.msra.mxu0 0.0
        %828 = vmatprep.mubr.f32.mxu0 0.0
        %829 = vmatmul.mubr.f32.gmra.mrb[0].mxu0 %v741
        %v830 = vpop.f32.mrb[0].mxu0
        %v831 = vadd.f32 0.0, %v830
        %v832 = vpop.f32.mrb[0].mxu0
        %833 = vmatprep.mubr.f32.mxu0 0.0
        %834 = vmatmul.mubr.f32.gmra.mrb[0].mxu0 %v744
        %v835 = vpop.f32.mrb[0].mxu0
        %v836 = vadd.f32 0.0, %v835
        %v837 = vpop.f32.mrb[0].mxu0
        %838 = vmatprep.mubr.f32.mxu0 0.0
        %839 = vmatmul.mubr.f32.gmra.mrb[0].mxu0 %v747
        %v840 = vpop.f32.mrb[0].mxu0
        %v841 = vadd.f32 0.0, %v840
        %v842 = vpop.f32.mrb[0].mxu0
        %843 = vmatprep.mubr.f32.mxu0 0.0
        %844 = vmatmul.mubr.f32.gmra.mrb[0].mxu0 %v750
        %v845 = vpop.f32.mrb[0].mxu0
        %v846 = vadd.f32 0.0, %v845
        %v847 = vpop.f32.mrb[0].mxu0
        %848 = vmatprep.mubr.f32.mxu0 0.0
        %849 = vmatmul.mubr.f32.gmra.mrb[0].mxu0 %v753
        %v850 = vpop.f32.mrb[0].mxu0
        %v851 = vadd.f32 0.0, %v850
        %v852 = vpop.f32.mrb[0].mxu0
        %853 = vmatprep.mubr.f32.mxu0 0.0
        %854 = vmatmul.mubr.f32.gmra.mrb[0].mxu0 %v756
        %v855 = vpop.f32.mrb[0].mxu0
        %v856 = vadd.f32 0.0, %v855
        %v857 = vpop.f32.mrb[0].mxu0
        %858 = vmatprep.mubr.f32.mxu0 0.0
        %859 = vmatmul.mubr.f32.gmra.mrb[0].mxu0 %v759
        %v860 = vpop.f32.mrb[0].mxu0
        %v861 = vadd.f32 0.0, %v860
        %v862 = vpop.f32.mrb[0].mxu0
        %863 = vmatprep.mubr.f32.mxu0 0.0
        %864 = vmatmul.mubr.f32.gmra.mrb[0].mxu0 %v762
        %v865 = vpop.f32.mrb[0].mxu0
        %v866 = vadd.f32 0.0, %v865
        %v867 = vpop.f32.mrb[0].mxu0
        %868 = vdwg.mxu0
        %v869 = vld [vmem:[%s383] sm:$0xff]
        %v870 = vld [vmem:[%s383 + $0x8] sm:$0xff]
        %v871 = vld [vmem:[%s383 + $0x10] sm:$0xff]
        %v872 = vld [vmem:[%s383 + $0x18] sm:$0xff]
        %v873 = vld [vmem:[%s383 + $0x20] sm:$0xff]
        %v874 = vld [vmem:[%s383 + $0x28] sm:$0xff]
        %v875 = vld [vmem:[%s383 + $0x30] sm:$0xff]
        %v876 = vld [vmem:[%s383 + $0x38] sm:$0xff]
        %v878 = vsel %vm739, %v869, 0
        %v881 = vsel %vm739, %v870, 0
        %v884 = vsel %vm739, %v871, 0
        %v887 = vsel %vm739, %v872, 0
        %v890 = vsel %vm739, %v873, 0
        %v893 = vsel %vm739, %v874, 0
        %v896 = vsel %vm739, %v875, 0
        %v899 = vsel %vm739, %v876, 0
        %901 = vmatprep.subr.mxu0 0.0
        %902 = vmatpush1.msra.mxu0 %v831
        %903 = vmatprep.subr.mxu0 0.0
        %904 = vmatpush1.msra.mxu0 %v836
        %905 = vmatprep.subr.mxu0 0.0
        %906 = vmatpush1.msra.mxu0 0.0
        %907 = vmatprep.subr.mxu0 0.0
        %908 = vmatpush1.msra.mxu0 0.0
        %909 = vmatprep.subr.mxu0 0.0
        %910 = vmatpush1.msra.mxu0 0.0
        %911 = vmatprep.subr.mxu0 0.0
        %912 = vmatpush1.msra.mxu0 0.0
        %913 = vmatprep.subr.mxu0 0.0
        %914 = vmatpush1.msra.mxu0 0.0
        %915 = vmatprep.subr.mxu0 0.0
        %916 = vmatpush1.msra.mxu0 0.0
        %917 = vmatprep.subr.mxu0 0.0
        %918 = vmatpush1.msra.mxu0 0.0
        %919 = vmatprep.subr.mxu0 0.0
        %920 = vmatpush1.msra.mxu0 0.0
        %921 = vmatprep.subr.mxu0 0.0
        %922 = vmatpush1.msra.mxu0 0.0
        %923 = vmatprep.subr.mxu0 0.0
        %924 = vmatpush1.msra.mxu0 0.0
        %925 = vmatprep.subr.mxu0 0.0
        %926 = vmatpush1.msra.mxu0 0.0
        %927 = vmatprep.subr.mxu0 0.0
        %928 = vmatpush1.msra.mxu0 0.0
        %929 = vmatprep.subr.mxu0 0.0
        %930 = vmatpush1.msra.mxu0 0.0
        %931 = vmatprep.subr.mxu0 0.0
        %932 = vmatpush1.msra.mxu0 0.0
        %933 = vmatprep.subr.mxu0 0.0
        %934 = vmatpush1.msra.mxu0 0.0
        %935 = vmatprep.subr.mxu0 0.0
        %936 = vmatpush1.msra.mxu0 0.0
        %937 = vmatprep.subr.mxu0 0.0
        %938 = vmatpush1.msra.mxu0 0.0
        %939 = vmatprep.subr.mxu0 0.0
        %940 = vmatpush1.msra.mxu0 0.0
        %941 = vmatprep.subr.mxu0 0.0
        %942 = vmatpush1.msra.mxu0 0.0
        %943 = vmatprep.subr.mxu0 0.0
        %944 = vmatpush1.msra.mxu0 0.0
        %945 = vmatprep.subr.mxu0 0.0
        %946 = vmatpush1.msra.mxu0 0.0
        %947 = vmatprep.subr.mxu0 0.0
        %948 = vmatpush1.msra.mxu0 0.0
        %949 = vmatprep.subr.mxu0 0.0
        %950 = vmatpush1.msra.mxu0 0.0
        %951 = vmatprep.subr.mxu0 0.0
        %952 = vmatpush1.msra.mxu0 0.0
        %953 = vmatprep.subr.mxu0 0.0
        %954 = vmatpush1.msra.mxu0 0.0
        %955 = vmatprep.subr.mxu0 0.0
        %956 = vmatpush1.msra.mxu0 0.0
        %957 = vmatprep.subr.mxu0 0.0
        %958 = vmatpush1.msra.mxu0 0.0
        %959 = vmatprep.subr.mxu0 0.0
        %960 = vmatpush1.msra.mxu0 0.0
        %961 = vmatprep.subr.mxu0 0.0
        %962 = vmatpush1.msra.mxu0 0.0
        %963 = vmatprep.subr.mxu0 0.0
        %964 = vmatpush1.msra.mxu0 0.0
        %965 = vmatprep.mubr.f32.mxu0 0.0
        %966 = vmatmul.mubr.f32.gmra.mrb[0].mxu0 %v878
        %v967 = vpop.f32.mrb[0].mxu0
        %v968 = vadd.f32 0.0, %v967
        %v969 = vpop.f32.mrb[0].mxu0
        %970 = vmatprep.mubr.f32.mxu0 0.0
        %971 = vmatmul.mubr.f32.gmra.mrb[0].mxu0 %v881
        %v972 = vpop.f32.mrb[0].mxu0
        %v973 = vadd.f32 0.0, %v972
        %v974 = vpop.f32.mrb[0].mxu0
        %975 = vmatprep.mubr.f32.mxu0 0.0
        %976 = vmatmul.mubr.f32.gmra.mrb[0].mxu0 %v884
        %v977 = vpop.f32.mrb[0].mxu0
        %v978 = vadd.f32 0.0, %v977
        %v979 = vpop.f32.mrb[0].mxu0
        %980 = vmatprep.mubr.f32.mxu0 0.0
        %981 = vmatmul.mubr.f32.gmra.mrb[0].mxu0 %v887
        %v982 = vpop.f32.mrb[0].mxu0
        %v983 = vadd.f32 0.0, %v982
        %v984 = vpop.f32.mrb[0].mxu0
        %985 = vmatprep.mubr.f32.mxu0 0.0
        %986 = vmatmul.mubr.f32.gmra.mrb[0].mxu0 %v890
        %v987 = vpop.f32.mrb[0].mxu0
        %v988 = vadd.f32 0.0, %v987
        %v989 = vpop.f32.mrb[0].mxu0
        %990 = vmatprep.mubr.f32.mxu0 0.0
        %991 = vmatmul.mubr.f32.gmra.mrb[0].mxu0 %v893
        %v992 = vpop.f32.mrb[0].mxu0
        %v993 = vadd.f32 0.0, %v992
        %v994 = vpop.f32.mrb[0].mxu0
        %995 = vmatprep.mubr.f32.mxu0 0.0
        %996 = vmatmul.mubr.f32.gmra.mrb[0].mxu0 %v896
        %v997 = vpop.f32.mrb[0].mxu0
        %v998 = vadd.f32 0.0, %v997
        %v999 = vpop.f32.mrb[0].mxu0
        %1000 = vmatprep.mubr.f32.mxu0 0.0
        %1001 = vmatmul.mubr.f32.gmra.mrb[0].mxu0 %v899
        %v1002 = vpop.f32.mrb[0].mxu0
        %v1003 = vadd.f32 0.0, %v1002
        %v1004 = vpop.f32.mrb[0].mxu0
        %1005 = vdwg.mxu0
        %vm1006 = vcmask 523264
        %1007 = vst.msk [vmem:[%s378] sm:$0xff] %vm1006, %v968
        %1008 = vst.msk [vmem:[%s378 + $0x8] sm:$0xff] %vm1006, %v973
        %1009 = vst.msk [vmem:[%s378 + $0x10] sm:$0xff] %vm1006, %v978
        %1010 = vst.msk [vmem:[%s378 + $0x18] sm:$0xff] %vm1006, %v983
        %1011 = vst.msk [vmem:[%s378 + $0x20] sm:$0xff] %vm1006, %v988
        %1012 = vst.msk [vmem:[%s378 + $0x28] sm:$0xff] %vm1006, %v993
        %1013 = vst.msk [vmem:[%s378 + $0x30] sm:$0xff] %vm1006, %v998
        %1014 = vst.msk [vmem:[%s378 + $0x38] sm:$0xff] %vm1006, %v1003
        %1015 = vmatprep.subr.mxu0 0.0
        %1016 = vmatpush1.msra.mxu0 %v841
        %1017 = vmatprep.subr.mxu0 0.0
        %1018 = vmatpush1.msra.mxu0 %v846
        %1019 = vmatprep.subr.mxu0 0.0
        %1020 = vmatpush1.msra.mxu0 0.0
        %1021 = vmatprep.subr.mxu0 0.0
        %1022 = vmatpush1.msra.mxu0 0.0
        %1023 = vmatprep.subr.mxu0 0.0
        %1024 = vmatpush1.msra.mxu0 0.0
        %1025 = vmatprep.subr.mxu0 0.0
        %1026 = vmatpush1.msra.mxu0 0.0
        %1027 = vmatprep.subr.mxu0 0.0
        %1028 = vmatpush1.msra.mxu0 0.0
        %1029 = vmatprep.subr.mxu0 0.0
        %1030 = vmatpush1.msra.mxu0 0.0
        %1031 = vmatprep.subr.mxu0 0.0
        %1032 = vmatpush1.msra.mxu0 0.0
        %1033 = vmatprep.subr.mxu0 0.0
        %1034 = vmatpush1.msra.mxu0 0.0
        %1035 = vmatprep.subr.mxu0 0.0
        %1036 = vmatpush1.msra.mxu0 0.0
        %1037 = vmatprep.subr.mxu0 0.0
        %1038 = vmatpush1.msra.mxu0 0.0
        %1039 = vmatprep.subr.mxu0 0.0
        %1040 = vmatpush1.msra.mxu0 0.0
        %1041 = vmatprep.subr.mxu0 0.0
        %1042 = vmatpush1.msra.mxu0 0.0
        %1043 = vmatprep.subr.mxu0 0.0
        %1044 = vmatpush1.msra.mxu0 0.0
        %1045 = vmatprep.subr.mxu0 0.0
        %1046 = vmatpush1.msra.mxu0 0.0
        %1047 = vmatprep.subr.mxu0 0.0
        %1048 = vmatpush1.msra.mxu0 0.0
        %1049 = vmatprep.subr.mxu0 0.0
        %1050 = vmatpush1.msra.mxu0 0.0
        %1051 = vmatprep.subr.mxu0 0.0
        %1052 = vmatpush1.msra.mxu0 0.0
        %1053 = vmatprep.subr.mxu0 0.0
        %1054 = vmatpush1.msra.mxu0 0.0
        %1055 = vmatprep.subr.mxu0 0.0
        %1056 = vmatpush1.msra.mxu0 0.0
        %1057 = vmatprep.subr.mxu0 0.0
        %1058 = vmatpush1.msra.mxu0 0.0
        %1059 = vmatprep.subr.mxu0 0.0
        %1060 = vmatpush1.msra.mxu0 0.0
        %1061 = vmatprep.subr.mxu0 0.0
        %1062 = vmatpush1.msra.mxu0 0.0
        %1063 = vmatprep.subr.mxu0 0.0
        %1064 = vmatpush1.msra.mxu0 0.0
        %1065 = vmatprep.subr.mxu0 0.0
        %1066 = vmatpush1.msra.mxu0 0.0
        %1067 = vmatprep.subr.mxu0 0.0
        %1068 = vmatpush1.msra.mxu0 0.0
        %1069 = vmatprep.subr.mxu0 0.0
        %1070 = vmatpush1.msra.mxu0 0.0
        %1071 = vmatprep.subr.mxu0 0.0
        %1072 = vmatpush1.msra.mxu0 0.0
        %1073 = vmatprep.subr.mxu0 0.0
        %1074 = vmatpush1.msra.mxu0 0.0
        %1075 = vmatprep.subr.mxu0 0.0
        %1076 = vmatpush1.msra.mxu0 0.0
        %1077 = vmatprep.subr.mxu0 0.0
        %1078 = vmatpush1.msra.mxu0 0.0
        %1079 = vmatprep.mubr.f32.mxu0 0.0
        %1080 = vmatmul.mubr.f32.gmra.mrb[0].mxu0 %v878
        %v1081 = vpop.f32.mrb[0].mxu0
        %v1082 = vadd.f32 0.0, %v1081
        %v1083 = vpop.f32.mrb[0].mxu0
        %1084 = vmatprep.mubr.f32.mxu0 0.0
        %1085 = vmatmul.mubr.f32.gmra.mrb[0].mxu0 %v881
        %v1086 = vpop.f32.mrb[0].mxu0
        %v1087 = vadd.f32 0.0, %v1086
        %v1088 = vpop.f32.mrb[0].mxu0
        %1089 = vmatprep.mubr.f32.mxu0 0.0
        %1090 = vmatmul.mubr.f32.gmra.mrb[0].mxu0 %v884
        %v1091 = vpop.f32.mrb[0].mxu0
        %v1092 = vadd.f32 0.0, %v1091
        %v1093 = vpop.f32.mrb[0].mxu0
        %1094 = vmatprep.mubr.f32.mxu0 0.0
        %1095 = vmatmul.mubr.f32.gmra.mrb[0].mxu0 %v887
        %v1096 = vpop.f32.mrb[0].mxu0
        %v1097 = vadd.f32 0.0, %v1096
        %v1098 = vpop.f32.mrb[0].mxu0
        %1099 = vmatprep.mubr.f32.mxu0 0.0
        %1100 = vmatmul.mubr.f32.gmra.mrb[0].mxu0 %v890
        %v1101 = vpop.f32.mrb[0].mxu0
        %v1102 = vadd.f32 0.0, %v1101
        %v1103 = vpop.f32.mrb[0].mxu0
        %1104 = vmatprep.mubr.f32.mxu0 0.0
        %1105 = vmatmul.mubr.f32.gmra.mrb[0].mxu0 %v893
        %v1106 = vpop.f32.mrb[0].mxu0
        %v1107 = vadd.f32 0.0, %v1106
        %v1108 = vpop.f32.mrb[0].mxu0
        %1109 = vmatprep.mubr.f32.mxu0 0.0
        %1110 = vmatmul.mubr.f32.gmra.mrb[0].mxu0 %v896
        %v1111 = vpop.f32.mrb[0].mxu0
        %v1112 = vadd.f32 0.0, %v1111
        %v1113 = vpop.f32.mrb[0].mxu0
        %1114 = vmatprep.mubr.f32.mxu0 0.0
        %1115 = vmatmul.mubr.f32.gmra.mrb[0].mxu0 %v899
        %v1116 = vpop.f32.mrb[0].mxu0
        %v1117 = vadd.f32 0.0, %v1116
        %v1118 = vpop.f32.mrb[0].mxu0
        %1119 = vdwg.mxu0
        %s1120 = scalar_lea.vmem %s378, 64 [#allocation12]
        %1121 = vst.msk [vmem:[%s1120] sm:$0xff] %vm1006, %v1082
        %1122 = vst.msk [vmem:[%s1120 + $0x8] sm:$0xff] %vm1006, %v1087
        %1123 = vst.msk [vmem:[%s1120 + $0x10] sm:$0xff] %vm1006, %v1092
        %1124 = vst.msk [vmem:[%s1120 + $0x18] sm:$0xff] %vm1006, %v1097
        %1125 = vst.msk [vmem:[%s1120 + $0x20] sm:$0xff] %vm1006, %v1102
        %1126 = vst.msk [vmem:[%s1120 + $0x28] sm:$0xff] %vm1006, %v1107
        %1127 = vst.msk [vmem:[%s1120 + $0x30] sm:$0xff] %vm1006, %v1112
        %1128 = vst.msk [vmem:[%s1120 + $0x38] sm:$0xff] %vm1006, %v1117
        %1129 = vmatprep.subr.mxu0 0.0
        %1130 = vmatpush1.msra.mxu0 %v851
        %1131 = vmatprep.subr.mxu0 0.0
        %1132 = vmatpush1.msra.mxu0 %v856
        %1133 = vmatprep.subr.mxu0 0.0
        %1134 = vmatpush1.msra.mxu0 0.0
        %1135 = vmatprep.subr.mxu0 0.0
        %1136 = vmatpush1.msra.mxu0 0.0
        %1137 = vmatprep.subr.mxu0 0.0
        %1138 = vmatpush1.msra.mxu0 0.0
        %1139 = vmatprep.subr.mxu0 0.0
        %1140 = vmatpush1.msra.mxu0 0.0
        %1141 = vmatprep.subr.mxu0 0.0
        %1142 = vmatpush1.msra.mxu0 0.0
        %1143 = vmatprep.subr.mxu0 0.0
        %1144 = vmatpush1.msra.mxu0 0.0
        %1145 = vmatprep.subr.mxu0 0.0
        %1146 = vmatpush1.msra.mxu0 0.0
        %1147 = vmatprep.subr.mxu0 0.0
        %1148 = vmatpush1.msra.mxu0 0.0
        %1149 = vmatprep.subr.mxu0 0.0
        %1150 = vmatpush1.msra.mxu0 0.0
        %1151 = vmatprep.subr.mxu0 0.0
        %1152 = vmatpush1.msra.mxu0 0.0
        %1153 = vmatprep.subr.mxu0 0.0
        %1154 = vmatpush1.msra.mxu0 0.0
        %1155 = vmatprep.subr.mxu0 0.0
        %1156 = vmatpush1.msra.mxu0 0.0
        %1157 = vmatprep.subr.mxu0 0.0
        %1158 = vmatpush1.msra.mxu0 0.0
        %1159 = vmatprep.subr.mxu0 0.0
        %1160 = vmatpush1.msra.mxu0 0.0
        %1161 = vmatprep.subr.mxu0 0.0
        %1162 = vmatpush1.msra.mxu0 0.0
        %1163 = vmatprep.subr.mxu0 0.0
        %1164 = vmatpush1.msra.mxu0 0.0
        %1165 = vmatprep.subr.mxu0 0.0
        %1166 = vmatpush1.msra.mxu0 0.0
        %1167 = vmatprep.subr.mxu0 0.0
        %1168 = vmatpush1.msra.mxu0 0.0
        %1169 = vmatprep.subr.mxu0 0.0
        %1170 = vmatpush1.msra.mxu0 0.0
        %1171 = vmatprep.subr.mxu0 0.0
        %1172 = vmatpush1.msra.mxu0 0.0
        %1173 = vmatprep.subr.mxu0 0.0
        %1174 = vmatpush1.msra.mxu0 0.0
        %1175 = vmatprep.subr.mxu0 0.0
        %1176 = vmatpush1.msra.mxu0 0.0
        %1177 = vmatprep.subr.mxu0 0.0
        %1178 = vmatpush1.msra.mxu0 0.0
        %1179 = vmatprep.subr.mxu0 0.0
        %1180 = vmatpush1.msra.mxu0 0.0
        %1181 = vmatprep.subr.mxu0 0.0
        %1182 = vmatpush1.msra.mxu0 0.0
        %1183 = vmatprep.subr.mxu0 0.0
        %1184 = vmatpush1.msra.mxu0 0.0
        %1185 = vmatprep.subr.mxu0 0.0
        %1186 = vmatpush1.msra.mxu0 0.0
        %1187 = vmatprep.subr.mxu0 0.0
        %1188 = vmatpush1.msra.mxu0 0.0
        %1189 = vmatprep.subr.mxu0 0.0
        %1190 = vmatpush1.msra.mxu0 0.0
        %1191 = vmatprep.subr.mxu0 0.0
        %1192 = vmatpush1.msra.mxu0 0.0
        %1193 = vmatprep.mubr.f32.mxu0 0.0
        %1194 = vmatmul.mubr.f32.gmra.mrb[0].mxu0 %v878
        %v1195 = vpop.f32.mrb[0].mxu0
        %v1196 = vadd.f32 0.0, %v1195
        %v1197 = vpop.f32.mrb[0].mxu0
        %1198 = vmatprep.mubr.f32.mxu0 0.0
        %1199 = vmatmul.mubr.f32.gmra.mrb[0].mxu0 %v881
        %v1200 = vpop.f32.mrb[0].mxu0
        %v1201 = vadd.f32 0.0, %v1200
        %v1202 = vpop.f32.mrb[0].mxu0
        %1203 = vmatprep.mubr.f32.mxu0 0.0
        %1204 = vmatmul.mubr.f32.gmra.mrb[0].mxu0 %v884
        %v1205 = vpop.f32.mrb[0].mxu0
        %v1206 = vadd.f32 0.0, %v1205
        %v1207 = vpop.f32.mrb[0].mxu0
        %1208 = vmatprep.mubr.f32.mxu0 0.0
        %1209 = vmatmul.mubr.f32.gmra.mrb[0].mxu0 %v887
        %v1210 = vpop.f32.mrb[0].mxu0
        %v1211 = vadd.f32 0.0, %v1210
        %v1212 = vpop.f32.mrb[0].mxu0
        %1213 = vmatprep.mubr.f32.mxu0 0.0
        %1214 = vmatmul.mubr.f32.gmra.mrb[0].mxu0 %v890
        %v1215 = vpop.f32.mrb[0].mxu0
        %v1216 = vadd.f32 0.0, %v1215
        %v1217 = vpop.f32.mrb[0].mxu0
        %1218 = vmatprep.mubr.f32.mxu0 0.0
        %1219 = vmatmul.mubr.f32.gmra.mrb[0].mxu0 %v893
        %v1220 = vpop.f32.mrb[0].mxu0
        %v1221 = vadd.f32 0.0, %v1220
        %v1222 = vpop.f32.mrb[0].mxu0
        %1223 = vmatprep.mubr.f32.mxu0 0.0
        %1224 = vmatmul.mubr.f32.gmra.mrb[0].mxu0 %v896
        %v1225 = vpop.f32.mrb[0].mxu0
        %v1226 = vadd.f32 0.0, %v1225
        %v1227 = vpop.f32.mrb[0].mxu0
        %1228 = vmatprep.mubr.f32.mxu0 0.0
        %1229 = vmatmul.mubr.f32.gmra.mrb[0].mxu0 %v899
        %v1230 = vpop.f32.mrb[0].mxu0
        %v1231 = vadd.f32 0.0, %v1230
        %v1232 = vpop.f32.mrb[0].mxu0
        %1233 = vdwg.mxu0
        %s1234 = scalar_lea.vmem %s378, 128 [#allocation12]
        %1235 = vst.msk [vmem:[%s1234] sm:$0xff] %vm1006, %v1196
        %1236 = vst.msk [vmem:[%s1234 + $0x8] sm:$0xff] %vm1006, %v1201
        %1237 = vst.msk [vmem:[%s1234 + $0x10] sm:$0xff] %vm1006, %v1206
        %1238 = vst.msk [vmem:[%s1234 + $0x18] sm:$0xff] %vm1006, %v1211
        %1239 = vst.msk [vmem:[%s1234 + $0x20] sm:$0xff] %vm1006, %v1216
        %1240 = vst.msk [vmem:[%s1234 + $0x28] sm:$0xff] %vm1006, %v1221
        %1241 = vst.msk [vmem:[%s1234 + $0x30] sm:$0xff] %vm1006, %v1226
        %1242 = vst.msk [vmem:[%s1234 + $0x38] sm:$0xff] %vm1006, %v1231
        %1243 = vmatprep.subr.mxu0 0.0
        %1244 = vmatpush1.msra.mxu0 %v861
        %1245 = vmatprep.subr.mxu0 0.0
        %1246 = vmatpush1.msra.mxu0 %v866
        %1247 = vmatprep.subr.mxu0 0.0
        %1248 = vmatpush1.msra.mxu0 0.0
        %1249 = vmatprep.subr.mxu0 0.0
        %1250 = vmatpush1.msra.mxu0 0.0
        %1251 = vmatprep.subr.mxu0 0.0
        %1252 = vmatpush1.msra.mxu0 0.0
        %1253 = vmatprep.subr.mxu0 0.0
        %1254 = vmatpush1.msra.mxu0 0.0
        %1255 = vmatprep.subr.mxu0 0.0
        %1256 = vmatpush1.msra.mxu0 0.0
        %1257 = vmatprep.subr.mxu0 0.0
        %1258 = vmatpush1.msra.mxu0 0.0
        %1259 = vmatprep.subr.mxu0 0.0
        %1260 = vmatpush1.msra.mxu0 0.0
        %1261 = vmatprep.subr.mxu0 0.0
        %1262 = vmatpush1.msra.mxu0 0.0
        %1263 = vmatprep.subr.mxu0 0.0
        %1264 = vmatpush1.msra.mxu0 0.0
        %1265 = vmatprep.subr.mxu0 0.0
        %1266 = vmatpush1.msra.mxu0 0.0
        %1267 = vmatprep.subr.mxu0 0.0
        %1268 = vmatpush1.msra.mxu0 0.0
        %1269 = vmatprep.subr.mxu0 0.0
        %1270 = vmatpush1.msra.mxu0 0.0
        %1271 = vmatprep.subr.mxu0 0.0
        %1272 = vmatpush1.msra.mxu0 0.0
        %1273 = vmatprep.subr.mxu0 0.0
        %1274 = vmatpush1.msra.mxu0 0.0
        %1275 = vmatprep.subr.mxu0 0.0
        %1276 = vmatpush1.msra.mxu0 0.0
        %1277 = vmatprep.subr.mxu0 0.0
        %1278 = vmatpush1.msra.mxu0 0.0
        %1279 = vmatprep.subr.mxu0 0.0
        %1280 = vmatpush1.msra.mxu0 0.0
        %1281 = vmatprep.subr.mxu0 0.0
        %1282 = vmatpush1.msra.mxu0 0.0
        %1283 = vmatprep.subr.mxu0 0.0
        %1284 = vmatpush1.msra.mxu0 0.0
        %1285 = vmatprep.subr.mxu0 0.0
        %1286 = vmatpush1.msra.mxu0 0.0
        %1287 = vmatprep.subr.mxu0 0.0
        %1288 = vmatpush1.msra.mxu0 0.0
        %1289 = vmatprep.subr.mxu0 0.0
        %1290 = vmatpush1.msra.mxu0 0.0
        %1291 = vmatprep.subr.mxu0 0.0
        %1292 = vmatpush1.msra.mxu0 0.0
        %1293 = vmatprep.subr.mxu0 0.0
        %1294 = vmatpush1.msra.mxu0 0.0
        %1295 = vmatprep.subr.mxu0 0.0
        %1296 = vmatpush1.msra.mxu0 0.0
        %1297 = vmatprep.subr.mxu0 0.0
        %1298 = vmatpush1.msra.mxu0 0.0
        %1299 = vmatprep.subr.mxu0 0.0
        %1300 = vmatpush1.msra.mxu0 0.0
        %1301 = vmatprep.subr.mxu0 0.0
        %1302 = vmatpush1.msra.mxu0 0.0
        %1303 = vmatprep.subr.mxu0 0.0
        %1304 = vmatpush1.msra.mxu0 0.0
        %1305 = vmatprep.subr.mxu0 0.0
        %1306 = vmatpush1.msra.mxu0 0.0
        %1307 = vmatprep.mubr.f32.mxu0 0.0
        %1308 = vmatmul.mubr.f32.gmra.mrb[0].mxu0 %v878
        %v1309 = vpop.f32.mrb[0].mxu0
        %v1310 = vadd.f32 0.0, %v1309
        %v1311 = vpop.f32.mrb[0].mxu0
        %1312 = vmatprep.mubr.f32.mxu0 0.0
        %1313 = vmatmul.mubr.f32.gmra.mrb[0].mxu0 %v881
        %v1314 = vpop.f32.mrb[0].mxu0
        %v1315 = vadd.f32 0.0, %v1314
        %v1316 = vpop.f32.mrb[0].mxu0
        %1317 = vmatprep.mubr.f32.mxu0 0.0
        %1318 = vmatmul.mubr.f32.gmra.mrb[0].mxu0 %v884
        %v1319 = vpop.f32.mrb[0].mxu0
        %v1320 = vadd.f32 0.0, %v1319
        %v1321 = vpop.f32.mrb[0].mxu0
        %1322 = vmatprep.mubr.f32.mxu0 0.0
        %1323 = vmatmul.mubr.f32.gmra.mrb[0].mxu0 %v887
        %v1324 = vpop.f32.mrb[0].mxu0
        %v1325 = vadd.f32 0.0, %v1324
        %v1326 = vpop.f32.mrb[0].mxu0
        %1327 = vmatprep.mubr.f32.mxu0 0.0
        %1328 = vmatmul.mubr.f32.gmra.mrb[0].mxu0 %v890
        %v1329 = vpop.f32.mrb[0].mxu0
        %v1330 = vadd.f32 0.0, %v1329
        %v1331 = vpop.f32.mrb[0].mxu0
        %1332 = vmatprep.mubr.f32.mxu0 0.0
        %1333 = vmatmul.mubr.f32.gmra.mrb[0].mxu0 %v893
        %v1334 = vpop.f32.mrb[0].mxu0
        %v1335 = vadd.f32 0.0, %v1334
        %v1336 = vpop.f32.mrb[0].mxu0
        %1337 = vmatprep.mubr.f32.mxu0 0.0
        %1338 = vmatmul.mubr.f32.gmra.mrb[0].mxu0 %v896
        %v1339 = vpop.f32.mrb[0].mxu0
        %v1340 = vadd.f32 0.0, %v1339
        %v1341 = vpop.f32.mrb[0].mxu0
        %1342 = vmatprep.mubr.f32.mxu0 0.0
        %1343 = vmatmul.mubr.f32.gmra.mrb[0].mxu0 %v899
        %v1344 = vpop.f32.mrb[0].mxu0
        %v1345 = vadd.f32 0.0, %v1344
        %v1346 = vpop.f32.mrb[0].mxu0
        %1347 = vdwg.mxu0
        %s1348 = scalar_lea.vmem %s378, 192 [#allocation12]
        %1349 = vst.msk [vmem:[%s1348] sm:$0xff] %vm1006, %v1310
        %1350 = vst.msk [vmem:[%s1348 + $0x8] sm:$0xff] %vm1006, %v1315
        %1351 = vst.msk [vmem:[%s1348 + $0x10] sm:$0xff] %vm1006, %v1320
        %1352 = vst.msk [vmem:[%s1348 + $0x18] sm:$0xff] %vm1006, %v1325
        %1353 = vst.msk [vmem:[%s1348 + $0x20] sm:$0xff] %vm1006, %v1330
        %1354 = vst.msk [vmem:[%s1348 + $0x28] sm:$0xff] %vm1006, %v1335
        %1355 = vst.msk [vmem:[%s1348 + $0x30] sm:$0xff] %vm1006, %v1340
        %1356 = vst.msk [vmem:[%s1348 + $0x38] sm:$0xff] %vm1006, %v1345
        %s1357 = sand.u32 %s206, 1
        %s1358 = scalar_lea.sflag [#allocation4], %s1357
        %s1359 = sand.u32 %s206, 1
        %s1360 = smul.addr %s1359, 256
        %s1361 = scalar_lea.vmem [#allocation12], %s1360
        // Predicated region
        $region69: #{tpu_custom_call.1} parent=47 // pred_check
          %p1362 = pneg %p216
        $region70: #{tpu_custom_call.1} parent=47 // pred_check_branch
          %1364 = sbr.rel (%p1362) target = $region72
        $region71: #{tpu_custom_call.1} parent=47 // pred_region
          %s1365 = smul.u32 8, %s32
          %s1367 = ssub.s32 4096, 4096
          %1368 = vsyncadd %s1358, %s1367
          %s1369 = smul.addr %s31, 32
          %s1370 = sadd.s32 %s1365, %s1369
          %s1371 = smul.addr %s1370, 128
          %s1372 = scalar_lea.hbm %s7, %s1371
          %s1373 = sshll.u32 %s1361, 4
          %s1374 = int_to_ptr.vmem [resolvable:$true] %s1373
          %1379 = dma.vmem_to_hbm [thread:$0]  %s1374, 4096, %s1372, %s1358, 128, 128, 8
        $region72: #{tpu_custom_call.1} parent=47 // pred_fallthru
          _
      $region48: #{tpu_custom_call.1} parent=5 // pred_fallthru
        _
      %p1380 = scmp.le.s32.totalorder 2, %s22
      // Predicated region
      $region73: #{tpu_custom_call.1} parent=5 // pred_check
        %p1381 = pneg %p1380
      $region74: #{tpu_custom_call.1} parent=5 // pred_check_branch
        %1383 = sbr.rel (%p1381) target = $region76
      $region75: #{tpu_custom_call.1} parent=5 // pred_region
        %s1384 = ssub.s32 %s22, 2
        // Predicated region
        $region77: #{tpu_custom_call.1} parent=75 // pred_check
          %p1385 = pneg %p222
        $region78: #{tpu_custom_call.1} parent=75 // pred_check_branch
          %1387 = sbr.rel (%p1385) target = $region80
        $region79: #{tpu_custom_call.1} parent=75 // pred_region
          %s1388 = sand.u32 %s207, 1
          %s1389 = scalar_lea.sflag [#allocation4], %s1388
          %s1390 = sand.u32 %s207, 1
          %s1391 = smul.addr %s1390, 256
          %s1392 = scalar_lea.vmem [#allocation12], %s1391
          %1393 = dma.done %s1389, 4096
        $region80: #{tpu_custom_call.1} parent=75 // pred_fallthru
          _
      $region76: #{tpu_custom_call.1} parent=5 // pred_fallthru
        _
    $region6: #{tpu_custom_call.1} parent=1 // loop_footer
      %s26 = sadd.s32 1, %s22
    $region7: #{tpu_custom_call.1} parent=1 // loop_footer_branch
      %21 = sbr.rel target = $region3
    $region8: #{tpu_custom_call.1} parent=1 // loop_exit
      _
    %1394 = vsyncpa [#allocation3], 1
    %s1395 = scalar_lea.sflag [#allocation3], 1
    %1396 = vsyncpa %s1395, 1
    %1397 = vsyncpa [#allocation4], 1
    %s1398 = scalar_lea.sflag [#allocation4], 1
    %1399 = vsyncpa %s1398, 1
    %1400 = vsyncpa [#allocation5], 1
    %s1401 = scalar_lea.sflag [#allocation5], 1
    %1402 = vsyncpa %s1401, 1
    %1403 = vsyncpa [#allocation8], 1
    %1404 = vsyncpa [#allocation11], 1

</llo_original>
